<compile_context>
chip_gen: v7x
topology: tpu7x:2x2x1
jax: 0.10.0
libtpu: 0.0.40
codegen_flags: <defaults>
</compile_context>

<pallas_src>
import functools
import math

import jax
import jax.numpy as jnp
from jax.experimental import pallas as pl
from jax.experimental.pallas import tpu as pltpu


def _attention_block_kernel(a_ref, q_ref, k_ref, v_ref, wqkv_ref, bqkv_ref,
                            wo_ref, bo_ref, out_ref, *, n_heads, d_k,
                            block_batch, seq):
    """One batch tile per grid step.

    a_ref    : (S, S)        A^T / sqrt(d_k)  (scale pre-folded), f32
    q_ref    : (Bt, S, D)    query activations (input dtype)
    k_ref    : (Bt, S, D)    key activations
    v_ref    : (Bt, S, D)    value activations
    wqkv_ref : (3, D, D)     stacked [Wq^T, Wk^T, Wv^T], compute dtype
    bqkv_ref : (3, 1, D)     stacked [bq, bk, bv], f32
    wo_ref   : (H, d_k, D)   Wo^T split into per-head row blocks, compute dtype
    bo_ref   : (1, D)        bo, f32
    out_ref  : (Bt, S, D)
    """
    D = n_heads * d_k
    M = block_batch * seq
    cdt = wqkv_ref.dtype  # compute (MXU operand) dtype

    # Mask (already transposed and scaled).  Loaded once; broadcast against the
    # (Bt, S, S) scores is implicit -- no per-batch materialized copies.
    a = a_ref[...]

    # ---- Q/K/V projections: batch folded into the matmul M dimension -------
    def project(x_ref, idx):
        x = x_ref[...].reshape(M, D).astype(cdt)          # leading-dim merge
        y = jnp.dot(x, wqkv_ref[idx], preferred_element_type=jnp.float32)
        y = y + bqkv_ref[idx]                              # (1, D) broadcast
        return y.reshape(block_batch, seq, D)              # leading-dim split

    qp = project(q_ref, 0)
    kp = project(k_ref, 1)
    vp = project(v_ref, 2)

    # ---- per-head attention, batched over the batch tile --------------------
    # Head loop kept unrolled (see header for why full head-batching via a
    # two-batch-dim einsum was not used).  Each head's context is folded
    # directly into the output projection (no lane-axis concat of d_k pieces).
    acc = jnp.zeros((M, D), jnp.float32)
    for h in range(n_heads):
        lo = h * d_k
        q_h = qp[:, :, lo:lo + d_k].astype(cdt)             # (Bt, S, d_k)
        k_h = kp[:, :, lo:lo + d_k].astype(cdt)
        v_h = vp[:, :, lo:lo + d_k].astype(cdt)

        # scores = Q K^T (the 1/sqrt(d_k) scale is already folded into `a`)
        scores = jnp.einsum('bqd,bkd->bqk', q_h, k_h,
                            preferred_element_type=jnp.float32)
        # p_attn = (scores / sqrt(d_k)) * A^T   (NO softmax, as in the module)
        p_attn = scores * a
        # TODO(synk): nn.Dropout(p=0.1) on p_attn omitted (eval-mode identity);
        # no clean deterministic equivalent of torch's RNG stream.

        ctx = jnp.einsum('bqk,bkd->bqd', p_attn.astype(cdt), v_h,
                         preferred_element_type=jnp.float32)  # (Bt, S, d_k)

        # Fold this head's context straight into the output projection.
        acc = acc + jnp.dot(ctx.reshape(M, d_k).astype(cdt), wo_ref[h],
                            preferred_element_type=jnp.float32)

    out = acc + bo_ref[...]
    # NOTE: with D=32 (< 128 lanes) the final store is a masked vst; a
    # lane-dense (M*D/128, 128) output relayout is only worth it once
    # block_batch*S grows large (see review) -- skipped here.
    out_ref[...] = out.reshape(out_ref.shape).astype(out_ref.dtype)


def prepare_attention_block_params(params, A, n_heads, *,
                                   compute_dtype=jnp.float32):
    """One-time parameter preprocessing (hoisted out of the per-call path).

    params = ((wq, bq), (wk, bk), (wv, bv), (wo, bo)); w: (D, D), b: (D,).
    Returns a dict of kernel-ready arrays.  Call once (e.g. under jit with the
    params) and reuse across forward calls.
    """
    (wq, bq), (wk, bk), (wv, bv), (wo, bo) = params
    D = wq.shape[0]
    assert D % n_heads == 0
    d_k = D // n_heads

    wqkv = jnp.stack([wq.T, wk.T, wv.T]).astype(compute_dtype)       # (3, D, D)
    bqkv = jnp.stack([bq, bk, bv]).reshape(3, 1, D).astype(jnp.float32)
    wo_h = wo.T.reshape(n_heads, d_k, D).astype(compute_dtype)       # per-head rows
    bo2 = bo.reshape(1, D).astype(jnp.float32)
    a_scaled = (A.T * (1.0 / math.sqrt(d_k))).astype(jnp.float32)    # fold scale
    return dict(a=a_scaled, wqkv=wqkv, bqkv=bqkv, wo=wo_h, bo=bo2)


def _default_block_batch(B, S):
    """>= 2 grid steps when possible (v7x dual-TC + pipeline overlap), while
    keeping each step <= ~1024 rows of M = block_batch * S."""
    if B < 2:
        return max(B, 1)
    cand = min(B // 2, max(1, 1024 // S))
    cand = max(cand, 1)
    while B % cand:
        cand -= 1
    return cand


def attention_block_apply(q, k, v, prepared, n_heads, *, block_batch=None):
    """Run the Pallas forward with pre-prepared parameters."""
    B, S, D = q.shape
    assert D % n_heads == 0
    d_k = D // n_heads

    if block_batch is None:
        block_batch = _default_block_batch(B, S)
    assert B % block_batch == 0
    nb = B // block_batch

    kernel = functools.partial(_attention_block_kernel, n_heads=n_heads,
                               d_k=d_k, block_batch=block_batch, seq=S)

    # Replicated (constant) blocks.  When S/D scale up (especially on v7x's
    # 64 MiB VMEM) add pipeline_mode=pl.Buffered(1) to these specs and/or store
    # `a` in bf16 / kv-tile it; irrelevant at S=8, D=32.
    rep2 = lambda i: (0, 0)
    rep3 = lambda i: (0, 0, 0)
    bsd = lambda i: (i, 0, 0)        # per-batch-tile 3-D blocks

    return pl.pallas_call(
        kernel,
        out_shape=jax.ShapeDtypeStruct((B, S, D), q.dtype),
        grid=(nb,),
        in_specs=[
            pl.BlockSpec((S, S), rep2),                        # A^T / sqrt(d_k)
            pl.BlockSpec((block_batch, S, D), bsd),            # q tile
            pl.BlockSpec((block_batch, S, D), bsd),            # k tile
            pl.BlockSpec((block_batch, S, D), bsd),            # v tile
            pl.BlockSpec((3, D, D), rep3),                     # stacked QKV wts
            pl.BlockSpec((3, 1, D), rep3),                     # stacked biases
            pl.BlockSpec((n_heads, d_k, D), rep3),             # Wo^T per head
            pl.BlockSpec((1, D), rep2),                        # bo
        ],
        out_specs=pl.BlockSpec((block_batch, S, D), bsd),
        compiler_params=pltpu.CompilerParams(
            dimension_semantics=("parallel",)),
    )(prepared["a"], q, k, v, prepared["wqkv"], prepared["bqkv"],
      prepared["wo"], prepared["bo"])


def attention_block_forward(q, k, v, A, params, n_heads, *,
                            compute_dtype=jnp.float32, block_batch=None):
    """Convenience wrapper: prepare + apply in one call."""
    prepared = prepare_attention_block_params(params, A, n_heads,
                                              compute_dtype=compute_dtype)
    return attention_block_apply(q, k, v, prepared, n_heads,
                                 block_batch=block_batch)


def _reference(q, k, v, A, params, n_heads):
    """Pure-JAX (f32) mirror of the PyTorch forward (dropout = identity)."""
    B, S, D = q.shape
    d_k = D // n_heads
    (wq, bq), (wk, bk), (wv, bv), (wo, bo) = params

    def proj(x, w, b):
        y = x @ w.T + b
        return y.reshape(B, S, n_heads, d_k).transpose(0, 2, 1, 3)

    Q, K, V = proj(q, wq, bq), proj(k, wk, bk), proj(v, wv, bv)
    scores = jnp.einsum('bhsd,bhtd->bhst', Q, K) / math.sqrt(d_k)
    p_attn = scores * A.T
    x = jnp.einsum('bhst,bhtd->bhsd', p_attn, V)
    x = x.transpose(0, 2, 1, 3).reshape(B, S, D)
    return x @ wo.T + bo


def _xavier_uniform(key, shape):
    fan_in, fan_out = shape[1], shape[0]
    bound = math.sqrt(6.0 / (fan_in + fan_out))
    return jax.random.uniform(key, shape, jnp.float32, -bound, bound)


if __name__ == "__main__":
    B, S, D, H = 2, 8, 32, 4

    key = jax.random.PRNGKey(0)
    ks = jax.random.split(key, 12)

    # Deterministic parameter init (xavier-uniform weights, small uniform
    # biases), mirroring the shapes created in AttentionBlock.__init__.
    def make_linear(kw, kb):
        w = _xavier_uniform(kw, (D, D))
        b = jax.random.uniform(kb, (D,), jnp.float32,
                               -1.0 / math.sqrt(D), 1.0 / math.sqrt(D))
        return w, b

    params = (
        make_linear(ks[0], ks[1]),   # linears[0] -> q
        make_linear(ks[2], ks[3]),   # linears[1] -> k
        make_linear(ks[4], ks[5]),   # linears[2] -> v
        make_linear(ks[6], ks[7]),   # linears[3] -> output
    )

    # spacetime mask A (S, S) -- synthetic deterministic matrix.
    A = jax.random.uniform(ks[8], (S, S), jnp.float32)

    q = jax.random.normal(ks[9], (B, S, D), jnp.float32)
    k = jax.random.normal(ks[10], (B, S, D), jnp.float32)
    v = jax.random.normal(ks[11], (B, S, D), jnp.float32)

    ref = _reference(q, k, v, A, params, H)

    # f32 compute path (default): parameters prepared once, tight check.
    prep_f32 = prepare_attention_block_params(params, A, H,
                                              compute_dtype=jnp.float32)
    out_f32 = jax.block_until_ready(attention_block_apply(q, k, v, prep_f32, H))
    if not jnp.allclose(out_f32, ref, rtol=1e-3, atol=1e-3):
        raise AssertionError("f32 Pallas kernel output does not match reference")

    # bf16 MXU-operand path (f32 accumulation): loose check relative to the
    # reference's max magnitude.
    prep_bf16 = prepare_attention_block_params(params, A, H,
                                               compute_dtype=jnp.bfloat16)
    out_bf16 = jax.block_until_ready(
        attention_block_apply(q, k, v, prep_bf16, H))
    err = jnp.max(jnp.abs(out_bf16.astype(jnp.float32) - ref))
    scale = jnp.max(jnp.abs(ref))
    if not bool(err <= 0.05 * scale):
        raise AssertionError(
            f"bf16 Pallas kernel error too large: {err} (ref scale {scale})")

    print("KERNEL_OK")
</pallas_src>

<mosaic_0001>
module attributes {stable_mosaic.version = 11 : i64} {
  func.func @_attention_block_kernel(%arg0: i32, %arg1: memref<8x8xf32, #tpu.memory_space<vmem>>, %arg2: memref<1x8x32xf32, #tpu.memory_space<vmem>>, %arg3: memref<1x8x32xf32, #tpu.memory_space<vmem>>, %arg4: memref<1x8x32xf32, #tpu.memory_space<vmem>>, %arg5: memref<3x32x32xf32, #tpu.memory_space<vmem>>, %arg6: memref<3x1x32xf32, #tpu.memory_space<vmem>>, %arg7: memref<4x8x32xf32, #tpu.memory_space<vmem>>, %arg8: memref<1x32xf32, #tpu.memory_space<vmem>>, %arg9: memref<1x8x32xf32, #tpu.memory_space<vmem>>) attributes {dimension_semantics = [#tpu.dimension_semantics<parallel>], iteration_bounds = array<i64: 2>, scalar_prefetch = 0 : i64, scratch_operands = 0 : i64, tpu.core_type = #tpu.core_type<tc>, window_params = [{pipeline_mode = #tpu.pipeline_mode<synchronous>, transform_indices = @transform_0, window_bounds = array<i64: 8, 8>}, {transform_indices = @transform_1, window_bounds = array<i64: 1, 8, 32>}, {transform_indices = @transform_2, window_bounds = array<i64: 1, 8, 32>}, {transform_indices = @transform_3, window_bounds = array<i64: 1, 8, 32>}, {pipeline_mode = #tpu.pipeline_mode<synchronous>, transform_indices = @transform_4, window_bounds = array<i64: 3, 32, 32>}, {pipeline_mode = #tpu.pipeline_mode<synchronous>, transform_indices = @transform_5, window_bounds = array<i64: 3, 1, 32>}, {pipeline_mode = #tpu.pipeline_mode<synchronous>, transform_indices = @transform_6, window_bounds = array<i64: 4, 8, 32>}, {pipeline_mode = #tpu.pipeline_mode<synchronous>, transform_indices = @transform_7, window_bounds = array<i64: 1, 32>}, {transform_indices = @transform_8, window_bounds = array<i64: 1, 8, 32>}]} {
    %c0 = arith.constant 0 : index
    %c0_0 = arith.constant 0 : index
    %0 = vector.load %arg1[%c0, %c0_0] : memref<8x8xf32, #tpu.memory_space<vmem>>, vector<8x8xf32>
    %c0_1 = arith.constant 0 : index
    %c0_2 = arith.constant 0 : index
    %c0_3 = arith.constant 0 : index
    %1 = vector.load %arg2[%c0_1, %c0_2, %c0_3] : memref<1x8x32xf32, #tpu.memory_space<vmem>>, vector<1x8x32xf32>
    %2 = vector.shape_cast %1 : vector<1x8x32xf32> to vector<8x32xf32>
    %c0_4 = arith.constant 0 : index
    %c0_5 = arith.constant 0 : index
    %c0_6 = arith.constant 0 : index
    %3 = vector.load %arg5[%c0_4, %c0_5, %c0_6] : memref<3x32x32xf32, #tpu.memory_space<vmem>>, vector<1x32x32xf32>
    %4 = vector.shape_cast %3 : vector<1x32x32xf32> to vector<32x32xf32>
    %cst = arith.constant dense<0.000000e+00> : vector<8x32xf32>
    %5 = tpu.matmul %2, %4, %cst {dimension_numbers = #tpu.dot_dimension_numbers<[1], [0], [0], [1], [0, 0, 1, 1], [], []>} : vector<8x32xf32>, vector<32x32xf32>, vector<8x32xf32> -> vector<8x32xf32>
    %c0_7 = arith.constant 0 : index
    %c0_8 = arith.constant 0 : index
    %c0_9 = arith.constant 0 : index
    %6 = vector.load %arg6[%c0_7, %c0_8, %c0_9] : memref<3x1x32xf32, #tpu.memory_space<vmem>>, vector<1x1x32xf32>
    %7 = vector.shape_cast %6 : vector<1x1x32xf32> to vector<1x32xf32>
    %8 = vector.broadcast %7 : vector<1x32xf32> to vector<8x32xf32>
    %9 = arith.addf %5, %8 : vector<8x32xf32>
    %10 = vector.shape_cast %9 : vector<8x32xf32> to vector<1x8x32xf32>
    %c0_10 = arith.constant 0 : index
    %c0_11 = arith.constant 0 : index
    %c0_12 = arith.constant 0 : index
    %11 = vector.load %arg3[%c0_10, %c0_11, %c0_12] : memref<1x8x32xf32, #tpu.memory_space<vmem>>, vector<1x8x32xf32>
    %12 = vector.shape_cast %11 : vector<1x8x32xf32> to vector<8x32xf32>
    %c1 = arith.constant 1 : index
    %c0_13 = arith.constant 0 : index
    %c0_14 = arith.constant 0 : index
    %13 = vector.load %arg5[%c1, %c0_13, %c0_14] : memref<3x32x32xf32, #tpu.memory_space<vmem>>, vector<1x32x32xf32>
    %14 = vector.shape_cast %13 : vector<1x32x32xf32> to vector<32x32xf32>
    %cst_15 = arith.constant dense<0.000000e+00> : vector<8x32xf32>
    %15 = tpu.matmul %12, %14, %cst_15 {dimension_numbers = #tpu.dot_dimension_numbers<[1], [0], [0], [1], [0, 0, 1, 1], [], []>} : vector<8x32xf32>, vector<32x32xf32>, vector<8x32xf32> -> vector<8x32xf32>
    %c1_16 = arith.constant 1 : index
    %c0_17 = arith.constant 0 : index
    %c0_18 = arith.constant 0 : index
    %16 = vector.load %arg6[%c1_16, %c0_17, %c0_18] : memref<3x1x32xf32, #tpu.memory_space<vmem>>, vector<1x1x32xf32>
    %17 = vector.shape_cast %16 : vector<1x1x32xf32> to vector<1x32xf32>
    %18 = vector.broadcast %17 : vector<1x32xf32> to vector<8x32xf32>
    %19 = arith.addf %15, %18 : vector<8x32xf32>
    %20 = vector.shape_cast %19 : vector<8x32xf32> to vector<1x8x32xf32>
    %c0_19 = arith.constant 0 : index
    %c0_20 = arith.constant 0 : index
    %c0_21 = arith.constant 0 : index
    %21 = vector.load %arg4[%c0_19, %c0_20, %c0_21] : memref<1x8x32xf32, #tpu.memory_space<vmem>>, vector<1x8x32xf32>
    %22 = vector.shape_cast %21 : vector<1x8x32xf32> to vector<8x32xf32>
    %c2 = arith.constant 2 : index
    %c0_22 = arith.constant 0 : index
    %c0_23 = arith.constant 0 : index
    %23 = vector.load %arg5[%c2, %c0_22, %c0_23] : memref<3x32x32xf32, #tpu.memory_space<vmem>>, vector<1x32x32xf32>
    %24 = vector.shape_cast %23 : vector<1x32x32xf32> to vector<32x32xf32>
    %cst_24 = arith.constant dense<0.000000e+00> : vector<8x32xf32>
    %25 = tpu.matmul %22, %24, %cst_24 {dimension_numbers = #tpu.dot_dimension_numbers<[1], [0], [0], [1], [0, 0, 1, 1], [], []>} : vector<8x32xf32>, vector<32x32xf32>, vector<8x32xf32> -> vector<8x32xf32>
    %c2_25 = arith.constant 2 : index
    %c0_26 = arith.constant 0 : index
    %c0_27 = arith.constant 0 : index
    %26 = vector.load %arg6[%c2_25, %c0_26, %c0_27] : memref<3x1x32xf32, #tpu.memory_space<vmem>>, vector<1x1x32xf32>
    %27 = vector.shape_cast %26 : vector<1x1x32xf32> to vector<1x32xf32>
    %28 = vector.broadcast %27 : vector<1x32xf32> to vector<8x32xf32>
    %29 = arith.addf %25, %28 : vector<8x32xf32>
    %30 = vector.shape_cast %29 : vector<8x32xf32> to vector<1x8x32xf32>
    %cst_28 = arith.constant 0.000000e+00 : f32
    %31 = vector.broadcast %cst_28 : f32 to vector<8x32xf32>
    %32 = vector.extract_strided_slice %10 {offsets = [0, 0, 0], sizes = [1, 8, 8], strides = [1, 1, 1]} : vector<1x8x32xf32> to vector<1x8x8xf32>
    %33 = vector.extract_strided_slice %20 {offsets = [0, 0, 0], sizes = [1, 8, 8], strides = [1, 1, 1]} : vector<1x8x32xf32> to vector<1x8x8xf32>
    %34 = vector.extract_strided_slice %30 {offsets = [0, 0, 0], sizes = [1, 8, 8], strides = [1, 1, 1]} : vector<1x8x32xf32> to vector<1x8x8xf32>
    "tpu.trace_start"() <{level = 10 : i32, message = "bqd,bkd->bqk"}> : () -> ()
    %cst_29 = arith.constant dense<0.000000e+00> : vector<1x8x8xf32>
    %35 = tpu.matmul %32, %33, %cst_29 {dimension_numbers = #tpu.dot_dimension_numbers<[2], [2], [1], [1], [0, 0, 0, 1, 1, 1], [0], [0]>} : vector<1x8x8xf32>, vector<1x8x8xf32>, vector<1x8x8xf32> -> vector<1x8x8xf32>
    "tpu.trace_stop"() : () -> ()
    %36 = vector.shape_cast %0 : vector<8x8xf32> to vector<1x8x8xf32>
    %37 = arith.mulf %35, %36 : vector<1x8x8xf32>
    "tpu.trace_start"() <{level = 10 : i32, message = "bqk,bkd->bqd"}> : () -> ()
    %cst_30 = arith.constant dense<0.000000e+00> : vector<1x8x8xf32>
    %38 = tpu.matmul %37, %34, %cst_30 {dimension_numbers = #tpu.dot_dimension_numbers<[2], [1], [1], [2], [0, 0, 0, 1, 1, 2], [0], [0]>} : vector<1x8x8xf32>, vector<1x8x8xf32>, vector<1x8x8xf32> -> vector<1x8x8xf32>
    "tpu.trace_stop"() : () -> ()
    %39 = vector.shape_cast %38 : vector<1x8x8xf32> to vector<8x8xf32>
    %c0_31 = arith.constant 0 : index
    %c0_32 = arith.constant 0 : index
    %c0_33 = arith.constant 0 : index
    %40 = vector.load %arg7[%c0_31, %c0_32, %c0_33] : memref<4x8x32xf32, #tpu.memory_space<vmem>>, vector<1x8x32xf32>
    %41 = vector.shape_cast %40 : vector<1x8x32xf32> to vector<8x32xf32>
    %cst_34 = arith.constant dense<0.000000e+00> : vector<8x32xf32>
    %42 = tpu.matmul %39, %41, %cst_34 {dimension_numbers = #tpu.dot_dimension_numbers<[1], [0], [0], [1], [0, 0, 1, 1], [], []>} : vector<8x8xf32>, vector<8x32xf32>, vector<8x32xf32> -> vector<8x32xf32>
    %43 = arith.addf %31, %42 : vector<8x32xf32>
    %44 = vector.extract_strided_slice %10 {offsets = [0, 0, 8], sizes = [1, 8, 8], strides = [1, 1, 1]} : vector<1x8x32xf32> to vector<1x8x8xf32>
    %45 = vector.extract_strided_slice %20 {offsets = [0, 0, 8], sizes = [1, 8, 8], strides = [1, 1, 1]} : vector<1x8x32xf32> to vector<1x8x8xf32>
    %46 = vector.extract_strided_slice %30 {offsets = [0, 0, 8], sizes = [1, 8, 8], strides = [1, 1, 1]} : vector<1x8x32xf32> to vector<1x8x8xf32>
    "tpu.trace_start"() <{level = 10 : i32, message = "bqd,bkd->bqk"}> : () -> ()
    %cst_35 = arith.constant dense<0.000000e+00> : vector<1x8x8xf32>
    %47 = tpu.matmul %44, %45, %cst_35 {dimension_numbers = #tpu.dot_dimension_numbers<[2], [2], [1], [1], [0, 0, 0, 1, 1, 1], [0], [0]>} : vector<1x8x8xf32>, vector<1x8x8xf32>, vector<1x8x8xf32> -> vector<1x8x8xf32>
    "tpu.trace_stop"() : () -> ()
    %48 = vector.shape_cast %0 : vector<8x8xf32> to vector<1x8x8xf32>
    %49 = arith.mulf %47, %48 : vector<1x8x8xf32>
    "tpu.trace_start"() <{level = 10 : i32, message = "bqk,bkd->bqd"}> : () -> ()
    %cst_36 = arith.constant dense<0.000000e+00> : vector<1x8x8xf32>
    %50 = tpu.matmul %49, %46, %cst_36 {dimension_numbers = #tpu.dot_dimension_numbers<[2], [1], [1], [2], [0, 0, 0, 1, 1, 2], [0], [0]>} : vector<1x8x8xf32>, vector<1x8x8xf32>, vector<1x8x8xf32> -> vector<1x8x8xf32>
    "tpu.trace_stop"() : () -> ()
    %51 = vector.shape_cast %50 : vector<1x8x8xf32> to vector<8x8xf32>
    %c1_37 = arith.constant 1 : index
    %c0_38 = arith.constant 0 : index
    %c0_39 = arith.constant 0 : index
    %52 = vector.load %arg7[%c1_37, %c0_38, %c0_39] : memref<4x8x32xf32, #tpu.memory_space<vmem>>, vector<1x8x32xf32>
    %53 = vector.shape_cast %52 : vector<1x8x32xf32> to vector<8x32xf32>
    %cst_40 = arith.constant dense<0.000000e+00> : vector<8x32xf32>
    %54 = tpu.matmul %51, %53, %cst_40 {dimension_numbers = #tpu.dot_dimension_numbers<[1], [0], [0], [1], [0, 0, 1, 1], [], []>} : vector<8x8xf32>, vector<8x32xf32>, vector<8x32xf32> -> vector<8x32xf32>
    %55 = arith.addf %43, %54 : vector<8x32xf32>
    %56 = vector.extract_strided_slice %10 {offsets = [0, 0, 16], sizes = [1, 8, 8], strides = [1, 1, 1]} : vector<1x8x32xf32> to vector<1x8x8xf32>
    %57 = vector.extract_strided_slice %20 {offsets = [0, 0, 16], sizes = [1, 8, 8], strides = [1, 1, 1]} : vector<1x8x32xf32> to vector<1x8x8xf32>
    %58 = vector.extract_strided_slice %30 {offsets = [0, 0, 16], sizes = [1, 8, 8], strides = [1, 1, 1]} : vector<1x8x32xf32> to vector<1x8x8xf32>
    "tpu.trace_start"() <{level = 10 : i32, message = "bqd,bkd->bqk"}> : () -> ()
    %cst_41 = arith.constant dense<0.000000e+00> : vector<1x8x8xf32>
    %59 = tpu.matmul %56, %57, %cst_41 {dimension_numbers = #tpu.dot_dimension_numbers<[2], [2], [1], [1], [0, 0, 0, 1, 1, 1], [0], [0]>} : vector<1x8x8xf32>, vector<1x8x8xf32>, vector<1x8x8xf32> -> vector<1x8x8xf32>
    "tpu.trace_stop"() : () -> ()
    %60 = vector.shape_cast %0 : vector<8x8xf32> to vector<1x8x8xf32>
    %61 = arith.mulf %59, %60 : vector<1x8x8xf32>
    "tpu.trace_start"() <{level = 10 : i32, message = "bqk,bkd->bqd"}> : () -> ()
    %cst_42 = arith.constant dense<0.000000e+00> : vector<1x8x8xf32>
    %62 = tpu.matmul %61, %58, %cst_42 {dimension_numbers = #tpu.dot_dimension_numbers<[2], [1], [1], [2], [0, 0, 0, 1, 1, 2], [0], [0]>} : vector<1x8x8xf32>, vector<1x8x8xf32>, vector<1x8x8xf32> -> vector<1x8x8xf32>
    "tpu.trace_stop"() : () -> ()
    %63 = vector.shape_cast %62 : vector<1x8x8xf32> to vector<8x8xf32>
    %c2_43 = arith.constant 2 : index
    %c0_44 = arith.constant 0 : index
    %c0_45 = arith.constant 0 : index
    %64 = vector.load %arg7[%c2_43, %c0_44, %c0_45] : memref<4x8x32xf32, #tpu.memory_space<vmem>>, vector<1x8x32xf32>
    %65 = vector.shape_cast %64 : vector<1x8x32xf32> to vector<8x32xf32>
    %cst_46 = arith.constant dense<0.000000e+00> : vector<8x32xf32>
    %66 = tpu.matmul %63, %65, %cst_46 {dimension_numbers = #tpu.dot_dimension_numbers<[1], [0], [0], [1], [0, 0, 1, 1], [], []>} : vector<8x8xf32>, vector<8x32xf32>, vector<8x32xf32> -> vector<8x32xf32>
    %67 = arith.addf %55, %66 : vector<8x32xf32>
    %68 = vector.extract_strided_slice %10 {offsets = [0, 0, 24], sizes = [1, 8, 8], strides = [1, 1, 1]} : vector<1x8x32xf32> to vector<1x8x8xf32>
    %69 = vector.extract_strided_slice %20 {offsets = [0, 0, 24], sizes = [1, 8, 8], strides = [1, 1, 1]} : vector<1x8x32xf32> to vector<1x8x8xf32>
    %70 = vector.extract_strided_slice %30 {offsets = [0, 0, 24], sizes = [1, 8, 8], strides = [1, 1, 1]} : vector<1x8x32xf32> to vector<1x8x8xf32>
    "tpu.trace_start"() <{level = 10 : i32, message = "bqd,bkd->bqk"}> : () -> ()
    %cst_47 = arith.constant dense<0.000000e+00> : vector<1x8x8xf32>
    %71 = tpu.matmul %68, %69, %cst_47 {dimension_numbers = #tpu.dot_dimension_numbers<[2], [2], [1], [1], [0, 0, 0, 1, 1, 1], [0], [0]>} : vector<1x8x8xf32>, vector<1x8x8xf32>, vector<1x8x8xf32> -> vector<1x8x8xf32>
    "tpu.trace_stop"() : () -> ()
    %72 = vector.shape_cast %0 : vector<8x8xf32> to vector<1x8x8xf32>
    %73 = arith.mulf %71, %72 : vector<1x8x8xf32>
    "tpu.trace_start"() <{level = 10 : i32, message = "bqk,bkd->bqd"}> : () -> ()
    %cst_48 = arith.constant dense<0.000000e+00> : vector<1x8x8xf32>
    %74 = tpu.matmul %73, %70, %cst_48 {dimension_numbers = #tpu.dot_dimension_numbers<[2], [1], [1], [2], [0, 0, 0, 1, 1, 2], [0], [0]>} : vector<1x8x8xf32>, vector<1x8x8xf32>, vector<1x8x8xf32> -> vector<1x8x8xf32>
    "tpu.trace_stop"() : () -> ()
    %75 = vector.shape_cast %74 : vector<1x8x8xf32> to vector<8x8xf32>
    %c3 = arith.constant 3 : index
    %c0_49 = arith.constant 0 : index
    %c0_50 = arith.constant 0 : index
    %76 = vector.load %arg7[%c3, %c0_49, %c0_50] : memref<4x8x32xf32, #tpu.memory_space<vmem>>, vector<1x8x32xf32>
    %77 = vector.shape_cast %76 : vector<1x8x32xf32> to vector<8x32xf32>
    %cst_51 = arith.constant dense<0.000000e+00> : vector<8x32xf32>
    %78 = tpu.matmul %75, %77, %cst_51 {dimension_numbers = #tpu.dot_dimension_numbers<[1], [0], [0], [1], [0, 0, 1, 1], [], []>} : vector<8x8xf32>, vector<8x32xf32>, vector<8x32xf32> -> vector<8x32xf32>
    %79 = arith.addf %67, %78 : vector<8x32xf32>
    %c0_52 = arith.constant 0 : index
    %c0_53 = arith.constant 0 : index
    %80 = vector.load %arg8[%c0_52, %c0_53] : memref<1x32xf32, #tpu.memory_space<vmem>>, vector<1x32xf32>
    %81 = vector.broadcast %80 : vector<1x32xf32> to vector<8x32xf32>
    %82 = arith.addf %79, %81 : vector<8x32xf32>
    %83 = vector.shape_cast %82 : vector<8x32xf32> to vector<1x8x32xf32>
    %c0_54 = arith.constant 0 : index
    %c0_55 = arith.constant 0 : index
    %c0_56 = arith.constant 0 : index
    %84 = vector.load %arg9[%c0_54, %c0_55, %c0_56] : memref<1x8x32xf32, #tpu.memory_space<vmem>>, vector<1x8x32xf32>
    tpu.vector_store %arg9[%c0_54, %c0_55, %c0_56], %83 {strides = array<i32>} : memref<1x8x32xf32, #tpu.memory_space<vmem>>, vector<1x8x32xf32>,
    return
  }
  func.func @transform_0(%arg0: i32) -> (i32, i32) {
    %c0_i32 = arith.constant 0 : i32
    %c0_i32_0 = arith.constant 0 : i32
    %c0_i32_1 = arith.constant 0 : i32
    return %c0_i32, %c0_i32_0 : i32, i32
  }
  func.func @transform_1(%arg0: i32) -> (i32, i32, i32) {
    %c0_i32 = arith.constant 0 : i32
    %c0_i32_0 = arith.constant 0 : i32
    %c0_i32_1 = arith.constant 0 : i32
    return %arg0, %c0_i32, %c0_i32_0 : i32, i32, i32
  }
  func.func @transform_2(%arg0: i32) -> (i32, i32, i32) {
    %c0_i32 = arith.constant 0 : i32
    %c0_i32_0 = arith.constant 0 : i32
    %c0_i32_1 = arith.constant 0 : i32
    return %arg0, %c0_i32, %c0_i32_0 : i32, i32, i32
  }
  func.func @transform_3(%arg0: i32) -> (i32, i32, i32) {
    %c0_i32 = arith.constant 0 : i32
    %c0_i32_0 = arith.constant 0 : i32
    %c0_i32_1 = arith.constant 0 : i32
    return %arg0, %c0_i32, %c0_i32_0 : i32, i32, i32
  }
  func.func @transform_4(%arg0: i32) -> (i32, i32, i32) {
    %c0_i32 = arith.constant 0 : i32
    %c0_i32_0 = arith.constant 0 : i32
    %c0_i32_1 = arith.constant 0 : i32
    %c0_i32_2 = arith.constant 0 : i32
    return %c0_i32, %c0_i32_0, %c0_i32_1 : i32, i32, i32
  }
  func.func @transform_5(%arg0: i32) -> (i32, i32, i32) {
    %c0_i32 = arith.constant 0 : i32
    %c0_i32_0 = arith.constant 0 : i32
    %c0_i32_1 = arith.constant 0 : i32
    %c0_i32_2 = arith.constant 0 : i32
    return %c0_i32, %c0_i32_0, %c0_i32_1 : i32, i32, i32
  }
  func.func @transform_6(%arg0: i32) -> (i32, i32, i32) {
    %c0_i32 = arith.constant 0 : i32
    %c0_i32_0 = arith.constant 0 : i32
    %c0_i32_1 = arith.constant 0 : i32
    %c0_i32_2 = arith.constant 0 : i32
    return %c0_i32, %c0_i32_0, %c0_i32_1 : i32, i32, i32
  }
  func.func @transform_7(%arg0: i32) -> (i32, i32) {
    %c0_i32 = arith.constant 0 : i32
    %c0_i32_0 = arith.constant 0 : i32
    %c0_i32_1 = arith.constant 0 : i32
    return %c0_i32, %c0_i32_0 : i32, i32
  }
  func.func @transform_8(%arg0: i32) -> (i32, i32, i32) {
    %c0_i32 = arith.constant 0 : i32
    %c0_i32_0 = arith.constant 0 : i32
    %c0_i32_1 = arith.constant 0 : i32
    return %arg0, %c0_i32, %c0_i32_0 : i32, i32, i32
  }
}

</mosaic_0001>

<llo_original>
// kernel: tpu_custom_call.1
$region0: #{tpu_custom_call.1}
  #allocation0 [shape = 'u32[]', space=smem, size = 0x4, offset = 0x4, fixed_abs, tag = 'smem constant byte address 0x4 - core index']
  #allocation1 [shape = 'u32[144,128]{1,0:T(1,128)}', space=vmem, size = 0x12000, scoped, tag = 'internal scratch']
  %s0 = inlined_call_operand.hbm [shape: f32[8,8], index: 0, kind: input, shape index: {}]
  %s1 = inlined_call_operand.hbm [shape: f32[2,8,32], index: 1, kind: input, shape index: {}]
  %s2 = inlined_call_operand.hbm [shape: f32[2,8,32], index: 2, kind: input, shape index: {}]
  %s3 = inlined_call_operand.hbm [shape: f32[2,8,32], index: 3, kind: input, shape index: {}]
  %s4 = inlined_call_operand.hbm [shape: f32[3,32,32], index: 4, kind: input, shape index: {}]
  %s5 = inlined_call_operand.vmem [shape: f32[3,1,32], index: 5, kind: input, shape index: {}]
  %s6 = inlined_call_operand.hbm [shape: f32[4,8,32], index: 6, kind: input, shape index: {}]
  %s7 = inlined_call_operand.vmem [shape: f32[1,32], index: 7, kind: input, shape index: {}]
  %s8 = inlined_call_operand.hbm [shape: f32[2,8,32], index: 8, kind: output, shape index: {}]
  %s9 = sld [smem:[#allocation0]]
  $region89: #{tpu_custom_call.1} parent=0
    _
  %s11 = ssub.s32 1, %s9
  %s12 = scalar_select 0, %s11, %s9
  $region1: #{tpu_custom_call.1} parent=0
    #allocation2 [shape = 'u8[4096]{0}', space=vmem, size = 0x1000, scoped, tag = 'input window, operand 0, single buffered']
    #allocation3 [shape = 's32[2]{0}', space=sflag, size = 0x8, scoped, tag = 'scoped memory for tpu_custom_call.1']
    #allocation4 [shape = 's32[2]{0}', space=sflag, size = 0x8, scoped, tag = 'scoped memory for tpu_custom_call.1']
    #allocation5 [shape = 'u8[8192]{0}', space=vmem, size = 0x2000, scoped, tag = 'input window, operand 1']
    #allocation6 [shape = 's32[2]{0}', space=sflag, size = 0x8, scoped, tag = 'scoped memory for tpu_custom_call.1']
    #allocation7 [shape = 'u8[8192]{0}', space=vmem, size = 0x2000, scoped, tag = 'input window, operand 2']
    #allocation8 [shape = 'u8[8192]{0}', space=vmem, size = 0x2000, scoped, tag = 'input window, operand 3']
    #allocation9 [shape = 's32[2]{0}', space=sflag, size = 0x8, scoped, tag = 'scoped memory for tpu_custom_call.1']
    #allocation10 [shape = 'u8[49152]{0}', space=vmem, size = 0xc000, scoped, tag = 'input window, operand 4, single buffered']
    #allocation11 [shape = 'u8[16384]{0}', space=vmem, size = 0x4000, scoped, tag = 'input window, operand 6, single buffered']
    #allocation12 [shape = 's32[1]{0}', space=sflag, size = 0x4, scoped, tag = 'scoped memory for tpu_custom_call.1']
    #allocation13 [shape = 'u8[8192]{0}', space=vmem, size = 0x2000, scoped, tag = 'output window, operand 0']
    %13 = vsyncpa [#allocation3], 0
    %14 = vsyncpa [#allocation6], 0
    %s15 = scalar_lea.sflag [#allocation6], 1
    %16 = vsyncpa %s15, 0
    %17 = vsyncpa [#allocation9], 0
    %s18 = scalar_lea.sflag [#allocation9], 1
    %19 = vsyncpa %s18, 0
    %20 = vsyncpa [#allocation12], 0
    %21 = vsyncpa [#allocation4], 0
    %s22 = scalar_lea.sflag [#allocation4], 1
    %23 = vsyncpa %s22, 0
    loop: start=0, step=1, limit=4
    $region2: #{tpu_custom_call.1} parent=1 // loop_pre_header
      _
    $region3: #{tpu_custom_call.1} parent=1 // loop_header
      %s25 = sphi 0, %s29
      %p26 = scmp.ge.s32.totalorder %s25, 4
      %s33 = sphi 0, %s33
      %s35 = sphi 0, %s33
      %s36 = sphi 0, %s35
      %s50 = sphi 0, %s36
      %s56 = sphi 0, %s58
      %s59 = sphi 0, %s56
      %s60 = sphi 0, %s59
      %s76 = sphi 0, %s60
      %s82 = sphi 0, %s84
      %s85 = sphi 0, %s82
      %s86 = sphi 0, %s85
      %s102 = sphi 0, %s86
      %s108 = sphi 0, %s110
      %s111 = sphi 0, %s108
      %s112 = sphi 0, %s111
      %s128 = sphi 0, %s112
      %s132 = sphi 0, %s132
      %s134 = sphi 0, %s132
      %s135 = sphi 0, %s134
      %s149 = sphi 0, %s135
      %s153 = sphi 0, %s153
      %s155 = sphi 0, %s153
      %s156 = sphi 0, %s155
      %s170 = sphi 0, %s156
      %s174 = sphi 0, %s174
      %s176 = sphi 0, %s174
      %s177 = sphi 0, %s176
      %s191 = sphi 0, %s177
      %s195 = sphi 0, %s195
      %s197 = sphi 0, %s195
      %s198 = sphi 0, %s197
      %s212 = sphi 0, %s198
      %s218 = sphi 0, %s220
      %s221 = sphi 0, %s218
      %s222 = sphi 0, %s221
      %s238 = sphi 0, %s222
    $region4: #{tpu_custom_call.1} parent=1 // loop_header_branch
      %28 = sbr.rel (%p26) target = $region8
    $region5: #{tpu_custom_call.1} parent=1 // loop_body
      %s30 = ssub.s32 %s25, 1
      %s31 = ssub.s32 %s25, 2
      %s32 = sadd.s32 %s25, 1
      %s34 = sadd.s32 %s33, 1
      %p37 = scmp.eq.s32.totalorder %s25, 1
      %p38 = scmp.ne.s32.totalorder %s33, %s35
      %p39 = scmp.eq.s32.totalorder %s25, 0
      %p40 = por %p38, %p39
      %p41 = scmp.ne.s32.totalorder %s33, %s35
      %p42 = scmp.eq.s32.totalorder %s30, 1
      %p43 = por %p41, %p42
      %p44 = scmp.ne.s32.totalorder %s35, %s36
      %p45 = scmp.eq.s32.totalorder %s30, 0
      %p46 = por %p44, %p45
      %p47 = scmp.ne.s32.totalorder %s35, %s36
      %p48 = scmp.eq.s32.totalorder %s31, 1
      %p49 = por %p47, %p48
      %p51 = scmp.ne.s32.totalorder %s36, %s50
      %p52 = scmp.eq.s32.totalorder %s31, 0
      %p53 = por %p51, %p52
      %s54 = ssub.s32 %s25, %s32
      %p55 = scmp.eq.s32.totalorder %s54, 0
      %s57 = sadd.s32 %s56, 1
      %s58 = scalar_select %p55, %s56, %s57
      %p61 = pneg %p55
      %p62 = scmp.eq.s32.totalorder %s25, 1
      %p63 = por %p61, %p62
      %p64 = scmp.ne.s32.totalorder %s56, %s59
      %p65 = scmp.eq.s32.totalorder %s25, 0
      %p66 = por %p64, %p65
      %p67 = scmp.ne.s32.totalorder %s56, %s59
      %p68 = scmp.eq.s32.totalorder %s30, 1
      %p69 = por %p67, %p68
      %p70 = scmp.ne.s32.totalorder %s59, %s60
      %p71 = scmp.eq.s32.totalorder %s30, 0
      %p72 = por %p70, %p71
      %p73 = scmp.ne.s32.totalorder %s59, %s60
      %p74 = scmp.eq.s32.totalorder %s31, 1
      %p75 = por %p73, %p74
      %p77 = scmp.ne.s32.totalorder %s60, %s76
      %p78 = scmp.eq.s32.totalorder %s31, 0
      %p79 = por %p77, %p78
      %s80 = ssub.s32 %s25, %s32
      %p81 = scmp.eq.s32.totalorder %s80, 0
      %s83 = sadd.s32 %s82, 1
      %s84 = scalar_select %p81, %s82, %s83
      %p87 = pneg %p81
      %p88 = scmp.eq.s32.totalorder %s25, 1
      %p89 = por %p87, %p88
      %p90 = scmp.ne.s32.totalorder %s82, %s85
      %p91 = scmp.eq.s32.totalorder %s25, 0
      %p92 = por %p90, %p91
      %p93 = scmp.ne.s32.totalorder %s82, %s85
      %p94 = scmp.eq.s32.totalorder %s30, 1
      %p95 = por %p93, %p94
      %p96 = scmp.ne.s32.totalorder %s85, %s86
      %p97 = scmp.eq.s32.totalorder %s30, 0
      %p98 = por %p96, %p97
      %p99 = scmp.ne.s32.totalorder %s85, %s86
      %p100 = scmp.eq.s32.totalorder %s31, 1
      %p101 = por %p99, %p100
      %p103 = scmp.ne.s32.totalorder %s86, %s102
      %p104 = scmp.eq.s32.totalorder %s31, 0
      %p105 = por %p103, %p104
      %s106 = ssub.s32 %s25, %s32
      %p107 = scmp.eq.s32.totalorder %s106, 0
      %s109 = sadd.s32 %s108, 1
      %s110 = scalar_select %p107, %s108, %s109
      %p113 = pneg %p107
      %p114 = scmp.eq.s32.totalorder %s25, 1
      %p115 = por %p113, %p114
      %p116 = scmp.ne.s32.totalorder %s108, %s111
      %p117 = scmp.eq.s32.totalorder %s25, 0
      %p118 = por %p116, %p117
      %p119 = scmp.ne.s32.totalorder %s108, %s111
      %p120 = scmp.eq.s32.totalorder %s30, 1
      %p121 = por %p119, %p120
      %p122 = scmp.ne.s32.totalorder %s111, %s112
      %p123 = scmp.eq.s32.totalorder %s30, 0
      %p124 = por %p122, %p123
      %p125 = scmp.ne.s32.totalorder %s111, %s112
      %p126 = scmp.eq.s32.totalorder %s31, 1
      %p127 = por %p125, %p126
      %p129 = scmp.ne.s32.totalorder %s112, %s128
      %p130 = scmp.eq.s32.totalorder %s31, 0
      %p131 = por %p129, %p130
      %s133 = sadd.s32 %s132, 1
      %p136 = scmp.eq.s32.totalorder %s25, 1
      %p137 = scmp.ne.s32.totalorder %s132, %s134
      %p138 = scmp.eq.s32.totalorder %s25, 0
      %p139 = por %p137, %p138
      %p140 = scmp.ne.s32.totalorder %s132, %s134
      %p141 = scmp.eq.s32.totalorder %s30, 1
      %p142 = por %p140, %p141
      %p143 = scmp.ne.s32.totalorder %s134, %s135
      %p144 = scmp.eq.s32.totalorder %s30, 0
      %p145 = por %p143, %p144
      %p146 = scmp.ne.s32.totalorder %s134, %s135
      %p147 = scmp.eq.s32.totalorder %s31, 1
      %p148 = por %p146, %p147
      %p150 = scmp.ne.s32.totalorder %s135, %s149
      %p151 = scmp.eq.s32.totalorder %s31, 0
      %p152 = por %p150, %p151
      %s154 = sadd.s32 %s153, 1
      %p157 = scmp.eq.s32.totalorder %s25, 1
      %p158 = scmp.ne.s32.totalorder %s153, %s155
      %p159 = scmp.eq.s32.totalorder %s25, 0
      %p160 = por %p158, %p159
      %p161 = scmp.ne.s32.totalorder %s153, %s155
      %p162 = scmp.eq.s32.totalorder %s30, 1
      %p163 = por %p161, %p162
      %p164 = scmp.ne.s32.totalorder %s155, %s156
      %p165 = scmp.eq.s32.totalorder %s30, 0
      %p166 = por %p164, %p165
      %p167 = scmp.ne.s32.totalorder %s155, %s156
      %p168 = scmp.eq.s32.totalorder %s31, 1
      %p169 = por %p167, %p168
      %p171 = scmp.ne.s32.totalorder %s156, %s170
      %p172 = scmp.eq.s32.totalorder %s31, 0
      %p173 = por %p171, %p172
      %s175 = sadd.s32 %s174, 1
      %p178 = scmp.eq.s32.totalorder %s25, 1
      %p179 = scmp.ne.s32.totalorder %s174, %s176
      %p180 = scmp.eq.s32.totalorder %s25, 0
      %p181 = por %p179, %p180
      %p182 = scmp.ne.s32.totalorder %s174, %s176
      %p183 = scmp.eq.s32.totalorder %s30, 1
      %p184 = por %p182, %p183
      %p185 = scmp.ne.s32.totalorder %s176, %s177
      %p186 = scmp.eq.s32.totalorder %s30, 0
      %p187 = por %p185, %p186
      %p188 = scmp.ne.s32.totalorder %s176, %s177
      %p189 = scmp.eq.s32.totalorder %s31, 1
      %p190 = por %p188, %p189
      %p192 = scmp.ne.s32.totalorder %s177, %s191
      %p193 = scmp.eq.s32.totalorder %s31, 0
      %p194 = por %p192, %p193
      %s196 = sadd.s32 %s195, 1
      %p199 = scmp.eq.s32.totalorder %s25, 1
      %p200 = scmp.ne.s32.totalorder %s195, %s197
      %p201 = scmp.eq.s32.totalorder %s25, 0
      %p202 = por %p200, %p201
      %p203 = scmp.ne.s32.totalorder %s195, %s197
      %p204 = scmp.eq.s32.totalorder %s30, 1
      %p205 = por %p203, %p204
      %p206 = scmp.ne.s32.totalorder %s197, %s198
      %p207 = scmp.eq.s32.totalorder %s30, 0
      %p208 = por %p206, %p207
      %p209 = scmp.ne.s32.totalorder %s197, %s198
      %p210 = scmp.eq.s32.totalorder %s31, 1
      %p211 = por %p209, %p210
      %p213 = scmp.ne.s32.totalorder %s198, %s212
      %p214 = scmp.eq.s32.totalorder %s31, 0
      %p215 = por %p213, %p214
      %s216 = ssub.s32 %s25, %s32
      %p217 = scmp.eq.s32.totalorder %s216, 0
      %s219 = sadd.s32 %s218, 1
      %s220 = scalar_select %p217, %s218, %s219
      %p223 = pneg %p217
      %p224 = scmp.eq.s32.totalorder %s25, 1
      %p225 = por %p223, %p224
      %p226 = scmp.ne.s32.totalorder %s218, %s221
      %p227 = scmp.eq.s32.totalorder %s25, 0
      %p228 = por %p226, %p227
      %p229 = scmp.ne.s32.totalorder %s218, %s221
      %p230 = scmp.eq.s32.totalorder %s30, 1
      %p231 = por %p229, %p230
      %p232 = scmp.ne.s32.totalorder %s221, %s222
      %p233 = scmp.eq.s32.totalorder %s30, 0
      %p234 = por %p232, %p233
      %p235 = scmp.ne.s32.totalorder %s221, %s222
      %p236 = scmp.eq.s32.totalorder %s31, 1
      %p237 = por %p235, %p236
      %p239 = scmp.ne.s32.totalorder %s222, %s238
      %p240 = scmp.eq.s32.totalorder %s31, 0
      %p241 = por %p239, %p240
      %p242 = scmp.le.s32.totalorder 1, %s25
      %p243 = scmp.lt.s32.totalorder %s25, 3
      %p244 = pnand %p242, %p243
      %p245 = pneg %p244
      // Predicated region
      $region9: #{tpu_custom_call.1} parent=5 // pred_check
        _
      $region10: #{tpu_custom_call.1} parent=5 // pred_check_branch
        %247 = sbr.rel (%p244) target = $region12
      $region11: #{tpu_custom_call.1} parent=5 // pred_region
        %s248 = ssub.s32 %s25, 1
        // Predicated region
        $region13: #{tpu_custom_call.1} parent=11 // pred_check
          %p249 = pneg %p46
        $region14: #{tpu_custom_call.1} parent=11 // pred_check_branch
          %251 = sbr.rel (%p249) target = $region16
        $region15: #{tpu_custom_call.1} parent=11 // pred_region
          %s253 = ssub.s32 128, 128
          %254 = vsyncadd [#allocation3], %s253
          %s256 = sshll.u32 [#allocation2], 4
          %s257 = int_to_ptr.vmem [resolvable:$true] %s256
          %259 = dma.hbm_to_vmem [thread:$0]  %s0, 128, %s257, [#allocation3]
        $region16: #{tpu_custom_call.1} parent=11 // pred_fallthru
          _
        // Predicated region
        $region17: #{tpu_custom_call.1} parent=11 // pred_check
          %p260 = pneg %p145
        $region18: #{tpu_custom_call.1} parent=11 // pred_check_branch
          %262 = sbr.rel (%p260) target = $region20
        $region19: #{tpu_custom_call.1} parent=11 // pred_region
          %s264 = ssub.s32 1536, 1536
          %265 = vsyncadd [#allocation9], %s264
          %s266 = sshll.u32 [#allocation10], 4
          %s267 = int_to_ptr.vmem [resolvable:$true] %s266
          %272 = dma.hbm_to_vmem [thread:$0]  %s4, 1536, %s267, [#allocation9], 128, 128, 8
        $region20: #{tpu_custom_call.1} parent=11 // pred_fallthru
          _
        // Predicated region
        $region21: #{tpu_custom_call.1} parent=11 // pred_check
          %p273 = pneg %p166
        $region22: #{tpu_custom_call.1} parent=11 // pred_check_branch
          %275 = sbr.rel (%p273) target = $region24
        $region23: #{tpu_custom_call.1} parent=11 // pred_region
          _
        $region24: #{tpu_custom_call.1} parent=11 // pred_fallthru
          _
        // Predicated region
        $region25: #{tpu_custom_call.1} parent=11 // pred_check
          %p276 = pneg %p187
        $region26: #{tpu_custom_call.1} parent=11 // pred_check_branch
          %278 = sbr.rel (%p276) target = $region28
        $region27: #{tpu_custom_call.1} parent=11 // pred_region
          %s280 = ssub.s32 512, 512
          %281 = vsyncadd [#allocation12], %s280
          %s282 = sshll.u32 [#allocation11], 4
          %s283 = int_to_ptr.vmem [resolvable:$true] %s282
          %288 = dma.hbm_to_vmem [thread:$0]  %s6, 512, %s283, [#allocation12], 128, 128, 8
        $region28: #{tpu_custom_call.1} parent=11 // pred_fallthru
          _
        // Predicated region
        $region29: #{tpu_custom_call.1} parent=11 // pred_check
          %p289 = pneg %p208
        $region30: #{tpu_custom_call.1} parent=11 // pred_check_branch
          %291 = sbr.rel (%p289) target = $region32
        $region31: #{tpu_custom_call.1} parent=11 // pred_region
          _
        $region32: #{tpu_custom_call.1} parent=11 // pred_fallthru
          _
      $region12: #{tpu_custom_call.1} parent=5 // pred_fallthru
        _
      %p292 = scmp.lt.s32.totalorder %s25, 2
      // Predicated region
      $region33: #{tpu_custom_call.1} parent=5 // pred_check
        %p293 = pneg %p292
      $region34: #{tpu_custom_call.1} parent=5 // pred_check_branch
        %295 = sbr.rel (%p293) target = $region36
      $region35: #{tpu_custom_call.1} parent=5 // pred_region
        // Predicated region
        $region37: #{tpu_custom_call.1} parent=35 // pred_check
          %p296 = pneg %p66
        $region38: #{tpu_custom_call.1} parent=35 // pred_check_branch
          %298 = sbr.rel (%p296) target = $region40
        $region39: #{tpu_custom_call.1} parent=35 // pred_region
          %s299 = sand.u32 %s25, 1
          %s300 = scalar_lea.sflag [#allocation6], %s299
          %s301 = sand.u32 %s56, 1
          %s302 = smul.addr %s301, 8
          %s303 = scalar_lea.vmem [#allocation5], %s302
          %s305 = ssub.s32 128, 128
          %306 = vsyncadd %s300, %s305
          %s307 = smul.addr %s25, 128
          %s308 = scalar_lea.hbm %s1, %s307
          %s310 = sshll.u32 %s303, 4
          %s311 = int_to_ptr.vmem [resolvable:$true] %s310
          %313 = dma.hbm_to_vmem [thread:$0]  %s308, 128, %s311, %s300
        $region40: #{tpu_custom_call.1} parent=35 // pred_fallthru
          _
        // Predicated region
        $region41: #{tpu_custom_call.1} parent=35 // pred_check
          %p314 = pneg %p92
        $region42: #{tpu_custom_call.1} parent=35 // pred_check_branch
          %316 = sbr.rel (%p314) target = $region44
        $region43: #{tpu_custom_call.1} parent=35 // pred_region
          %s317 = sand.u32 %s25, 1
          %s318 = scalar_lea.sflag [#allocation6], %s317
          %s319 = sand.u32 %s82, 1
          %s320 = smul.addr %s319, 8
          %s321 = scalar_lea.vmem [#allocation7], %s320
          %s323 = ssub.s32 128, 128
          %324 = vsyncadd %s318, %s323
          %s325 = smul.addr %s25, 128
          %s326 = scalar_lea.hbm %s2, %s325
          %s328 = sshll.u32 %s321, 4
          %s329 = int_to_ptr.vmem [resolvable:$true] %s328
          %331 = dma.hbm_to_vmem [thread:$0]  %s326, 128, %s329, %s318
        $region44: #{tpu_custom_call.1} parent=35 // pred_fallthru
          _
        // Predicated region
        $region45: #{tpu_custom_call.1} parent=35 // pred_check
          %p332 = pneg %p118
        $region46: #{tpu_custom_call.1} parent=35 // pred_check_branch
          %334 = sbr.rel (%p332) target = $region48
        $region47: #{tpu_custom_call.1} parent=35 // pred_region
          %s335 = sand.u32 %s25, 1
          %s336 = scalar_lea.sflag [#allocation9], %s335
          %s337 = sand.u32 %s108, 1
          %s338 = smul.addr %s337, 8
          %s339 = scalar_lea.vmem [#allocation8], %s338
          %s341 = ssub.s32 128, 128
          %342 = vsyncadd %s336, %s341
          %s343 = smul.addr %s25, 128
          %s344 = scalar_lea.hbm %s3, %s343
          %s346 = sshll.u32 %s339, 4
          %s347 = int_to_ptr.vmem [resolvable:$true] %s346
          %349 = dma.hbm_to_vmem [thread:$0]  %s344, 128, %s347, %s336
        $region48: #{tpu_custom_call.1} parent=35 // pred_fallthru
          _
      $region36: #{tpu_custom_call.1} parent=5 // pred_fallthru
        _
      %p350 = scmp.le.s32.totalorder 1, %s25
      %p351 = scmp.lt.s32.totalorder %s25, 3
      %p352 = pnand %p350, %p351
      %p353 = pneg %p352
      // Predicated region
      $region49: #{tpu_custom_call.1} parent=5 // pred_check
        _
      $region50: #{tpu_custom_call.1} parent=5 // pred_check_branch
        %355 = sbr.rel (%p352) target = $region52
      $region51: #{tpu_custom_call.1} parent=5 // pred_region
        %s356 = ssub.s32 %s25, 1
        // Predicated region
        $region53: #{tpu_custom_call.1} parent=51 // pred_check
          %p357 = pneg %p46
        $region54: #{tpu_custom_call.1} parent=51 // pred_check_branch
          %359 = sbr.rel (%p357) target = $region56
        $region55: #{tpu_custom_call.1} parent=51 // pred_region
          %360 = dma.done [#allocation3], 128
        $region56: #{tpu_custom_call.1} parent=51 // pred_fallthru
          _
        %s361 = sand.u32 %s30, 1
        %s362 = scalar_lea.sflag [#allocation6], %s361
        %s363 = sand.u32 %s59, 1
        %s364 = smul.addr %s363, 8
        %s365 = scalar_lea.vmem [#allocation5], %s364
        // Predicated region
        $region57: #{tpu_custom_call.1} parent=51 // pred_check
          %p366 = pneg %p72
        $region58: #{tpu_custom_call.1} parent=51 // pred_check_branch
          %368 = sbr.rel (%p366) target = $region60
        $region59: #{tpu_custom_call.1} parent=51 // pred_region
          %369 = dma.done %s362, 128
        $region60: #{tpu_custom_call.1} parent=51 // pred_fallthru
          _
        %s370 = sand.u32 %s30, 1
        %s371 = scalar_lea.sflag [#allocation6], %s370
        %s372 = sand.u32 %s85, 1
        %s373 = smul.addr %s372, 8
        %s374 = scalar_lea.vmem [#allocation7], %s373
        // Predicated region
        $region61: #{tpu_custom_call.1} parent=51 // pred_check
          %p375 = pneg %p98
        $region62: #{tpu_custom_call.1} parent=51 // pred_check_branch
          %377 = sbr.rel (%p375) target = $region64
        $region63: #{tpu_custom_call.1} parent=51 // pred_region
          %378 = dma.done %s371, 128
        $region64: #{tpu_custom_call.1} parent=51 // pred_fallthru
          _
        %s379 = sand.u32 %s30, 1
        %s380 = scalar_lea.sflag [#allocation9], %s379
        %s381 = sand.u32 %s111, 1
        %s382 = smul.addr %s381, 8
        %s383 = scalar_lea.vmem [#allocation8], %s382
        // Predicated region
        $region65: #{tpu_custom_call.1} parent=51 // pred_check
          %p384 = pneg %p124
        $region66: #{tpu_custom_call.1} parent=51 // pred_check_branch
          %386 = sbr.rel (%p384) target = $region68
        $region67: #{tpu_custom_call.1} parent=51 // pred_region
          %387 = dma.done %s380, 128
        $region68: #{tpu_custom_call.1} parent=51 // pred_fallthru
          _
        // Predicated region
        $region69: #{tpu_custom_call.1} parent=51 // pred_check
          %p388 = pneg %p145
        $region70: #{tpu_custom_call.1} parent=51 // pred_check_branch
          %390 = sbr.rel (%p388) target = $region72
        $region71: #{tpu_custom_call.1} parent=51 // pred_region
          %391 = dma.done [#allocation9], 1536
        $region72: #{tpu_custom_call.1} parent=51 // pred_fallthru
          _
        // Predicated region
        $region73: #{tpu_custom_call.1} parent=51 // pred_check
          %p392 = pneg %p187
        $region74: #{tpu_custom_call.1} parent=51 // pred_check_branch
          %394 = sbr.rel (%p392) target = $region76
        $region75: #{tpu_custom_call.1} parent=51 // pred_region
          %395 = dma.done [#allocation12], 512
        $region76: #{tpu_custom_call.1} parent=51 // pred_fallthru
          _
        %p396 = pneg %p46
        %p397 = pneg %p43
        %s398 = sand.u32 %s30, 1
        %s399 = scalar_lea.sflag [#allocation6], %s398
        %s400 = sand.u32 %s59, 1
        %s401 = smul.addr %s400, 8
        %s402 = scalar_lea.vmem [#allocation5], %s401
        %p403 = pneg %p72
        %p404 = pneg %p69
        %s405 = sand.u32 %s30, 1
        %s406 = scalar_lea.sflag [#allocation6], %s405
        %s407 = sand.u32 %s85, 1
        %s408 = smul.addr %s407, 8
        %s409 = scalar_lea.vmem [#allocation7], %s408
        %p410 = pneg %p98
        %p411 = pneg %p95
        %s412 = sand.u32 %s30, 1
        %s413 = scalar_lea.sflag [#allocation9], %s412
        %s414 = sand.u32 %s111, 1
        %s415 = smul.addr %s414, 8
        %s416 = scalar_lea.vmem [#allocation8], %s415
        %p417 = pneg %p124
        %p418 = pneg %p121
        %p419 = pneg %p145
        %p420 = pneg %p142
        %p421 = pneg %p166
        %p422 = pneg %p163
        %p423 = pneg %p187
        %p424 = pneg %p184
        %p425 = pneg %p208
        %p426 = pneg %p205
        %p427 = pneg %p234
        %p428 = pneg %p231
        %s429 = sand.u32 %s221, 1
        %s430 = scalar_lea.sflag [#allocation4], %s429
        %s431 = sand.u32 %s221, 1
        %s432 = smul.addr %s431, 8
        %s433 = scalar_lea.vmem [#allocation13], %s432
        %v434 = vld [vmem:[#allocation2] sm:$0xff]
        %v435 = vld [vmem:[%s365] sm:$0xff]
        %v436 = vld [vmem:[#allocation10] sm:$0xff]
        %v437 = vld [vmem:[#allocation10 + $0x8] sm:$0xff]
        %v438 = vld [vmem:[#allocation10 + $0x10] sm:$0xff]
        %v439 = vld [vmem:[#allocation10 + $0x18] sm:$0xff]
        %v440 = vld [vmem:[%s5] sm:$0x1]
        %v442 = vlaneseq
        %v443 = vshrl.u32 %v442, 7
        %v444 = vsub.s32 0, %v443
        %v445 = vrot.slane %v440, %v444
        %vm447 = vcmask 261120
        %v449 = vsel %vm447, %v435, 0
        %451 = vmatprep.subr.mxu0 0.0
        %452 = vmatpush1.msra.mxu0 %v436
        %453 = vmatprep.subr.mxu0 0.0
        %454 = vmatpush1.msra.mxu0 %v437
        %455 = vmatprep.subr.mxu0 0.0
        %456 = vmatpush1.msra.mxu0 %v438
        %457 = vmatprep.subr.mxu0 0.0
        %458 = vmatpush1.msra.mxu0 %v439
        %459 = vmatprep.subr.mxu0 0.0
        %460 = vmatpush1.msra.mxu0 0.0
        %461 = vmatprep.subr.mxu0 0.0
        %462 = vmatpush1.msra.mxu0 0.0
        %463 = vmatprep.subr.mxu0 0.0
        %464 = vmatpush1.msra.mxu0 0.0
        %465 = vmatprep.subr.mxu0 0.0
        %466 = vmatpush1.msra.mxu0 0.0
        %467 = vmatprep.subr.mxu0 0.0
        %468 = vmatpush1.msra.mxu0 0.0
        %469 = vmatprep.subr.mxu0 0.0
        %470 = vmatpush1.msra.mxu0 0.0
        %471 = vmatprep.subr.mxu0 0.0
        %472 = vmatpush1.msra.mxu0 0.0
        %473 = vmatprep.subr.mxu0 0.0
        %474 = vmatpush1.msra.mxu0 0.0
        %475 = vmatprep.subr.mxu0 0.0
        %476 = vmatpush1.msra.mxu0 0.0
        %477 = vmatprep.subr.mxu0 0.0
        %478 = vmatpush1.msra.mxu0 0.0
        %479 = vmatprep.subr.mxu0 0.0
        %480 = vmatpush1.msra.mxu0 0.0
        %481 = vmatprep.subr.mxu0 0.0
        %482 = vmatpush1.msra.mxu0 0.0
        %483 = vmatprep.subr.mxu0 0.0
        %484 = vmatpush1.msra.mxu0 0.0
        %485 = vmatprep.subr.mxu0 0.0
        %486 = vmatpush1.msra.mxu0 0.0
        %487 = vmatprep.subr.mxu0 0.0
        %488 = vmatpush1.msra.mxu0 0.0
        %489 = vmatprep.subr.mxu0 0.0
        %490 = vmatpush1.msra.mxu0 0.0
        %491 = vmatprep.subr.mxu0 0.0
        %492 = vmatpush1.msra.mxu0 0.0
        %493 = vmatprep.subr.mxu0 0.0
        %494 = vmatpush1.msra.mxu0 0.0
        %495 = vmatprep.subr.mxu0 0.0
        %496 = vmatpush1.msra.mxu0 0.0
        %497 = vmatprep.subr.mxu0 0.0
        %498 = vmatpush1.msra.mxu0 0.0
        %499 = vmatprep.subr.mxu0 0.0
        %500 = vmatpush1.msra.mxu0 0.0
        %501 = vmatprep.subr.mxu0 0.0
        %502 = vmatpush1.msra.mxu0 0.0
        %503 = vmatprep.subr.mxu0 0.0
        %504 = vmatpush1.msra.mxu0 0.0
        %505 = vmatprep.subr.mxu0 0.0
        %506 = vmatpush1.msra.mxu0 0.0
        %507 = vmatprep.subr.mxu0 0.0
        %508 = vmatpush1.msra.mxu0 0.0
        %509 = vmatprep.subr.mxu0 0.0
        %510 = vmatpush1.msra.mxu0 0.0
        %511 = vmatprep.subr.mxu0 0.0
        %512 = vmatpush1.msra.mxu0 0.0
        %513 = vmatprep.subr.mxu0 0.0
        %514 = vmatpush1.msra.mxu0 0.0
        %515 = vmatprep.mubr.f32.mxu0 0.0
        %516 = vmatmul.mubr.f32.gmra.mrb[0].mxu0 %v449
        %v517 = vpop.f32.mrb[0].mxu0
        %v518 = vadd.f32 %v445, %v517
        %v519 = vpop.f32.mrb[0].mxu0
        %520 = vdwg.mxu0
        %v521 = vld [vmem:[%s374] sm:$0xff]
        %s522 = scalar_lea.vmem [#allocation10], 32
        %v523 = vld [vmem:[%s522] sm:$0xff]
        %v524 = vld [vmem:[%s522 + $0x8] sm:$0xff]
        %v525 = vld [vmem:[%s522 + $0x10] sm:$0xff]
        %v526 = vld [vmem:[%s522 + $0x18] sm:$0xff]
        %s527 = scalar_lea.vmem %s5, 1
        %v528 = vld [vmem:[%s527] sm:$0x1]
        %v530 = vlaneseq
        %v531 = vshrl.u32 %v530, 7
        %v532 = vsub.s32 0, %v531
        %v533 = vrot.slane %v528, %v532
        %v536 = vsel %vm447, %v521, 0
        %538 = vmatprep.subr.mxu0 0.0
        %539 = vmatpush1.msra.mxu0 %v523
        %540 = vmatprep.subr.mxu0 0.0
        %541 = vmatpush1.msra.mxu0 %v524
        %542 = vmatprep.subr.mxu0 0.0
        %543 = vmatpush1.msra.mxu0 %v525
        %544 = vmatprep.subr.mxu0 0.0
        %545 = vmatpush1.msra.mxu0 %v526
        %546 = vmatprep.subr.mxu0 0.0
        %547 = vmatpush1.msra.mxu0 0.0
        %548 = vmatprep.subr.mxu0 0.0
        %549 = vmatpush1.msra.mxu0 0.0
        %550 = vmatprep.subr.mxu0 0.0
        %551 = vmatpush1.msra.mxu0 0.0
        %552 = vmatprep.subr.mxu0 0.0
        %553 = vmatpush1.msra.mxu0 0.0
        %554 = vmatprep.subr.mxu0 0.0
        %555 = vmatpush1.msra.mxu0 0.0
        %556 = vmatprep.subr.mxu0 0.0
        %557 = vmatpush1.msra.mxu0 0.0
        %558 = vmatprep.subr.mxu0 0.0
        %559 = vmatpush1.msra.mxu0 0.0
        %560 = vmatprep.subr.mxu0 0.0
        %561 = vmatpush1.msra.mxu0 0.0
        %562 = vmatprep.subr.mxu0 0.0
        %563 = vmatpush1.msra.mxu0 0.0
        %564 = vmatprep.subr.mxu0 0.0
        %565 = vmatpush1.msra.mxu0 0.0
        %566 = vmatprep.subr.mxu0 0.0
        %567 = vmatpush1.msra.mxu0 0.0
        %568 = vmatprep.subr.mxu0 0.0
        %569 = vmatpush1.msra.mxu0 0.0
        %570 = vmatprep.subr.mxu0 0.0
        %571 = vmatpush1.msra.mxu0 0.0
        %572 = vmatprep.subr.mxu0 0.0
        %573 = vmatpush1.msra.mxu0 0.0
        %574 = vmatprep.subr.mxu0 0.0
        %575 = vmatpush1.msra.mxu0 0.0
        %576 = vmatprep.subr.mxu0 0.0
        %577 = vmatpush1.msra.mxu0 0.0
        %578 = vmatprep.subr.mxu0 0.0
        %579 = vmatpush1.msra.mxu0 0.0
        %580 = vmatprep.subr.mxu0 0.0
        %581 = vmatpush1.msra.mxu0 0.0
        %582 = vmatprep.subr.mxu0 0.0
        %583 = vmatpush1.msra.mxu0 0.0
        %584 = vmatprep.subr.mxu0 0.0
        %585 = vmatpush1.msra.mxu0 0.0
        %586 = vmatprep.subr.mxu0 0.0
        %587 = vmatpush1.msra.mxu0 0.0
        %588 = vmatprep.subr.mxu0 0.0
        %589 = vmatpush1.msra.mxu0 0.0
        %590 = vmatprep.subr.mxu0 0.0
        %591 = vmatpush1.msra.mxu0 0.0
        %592 = vmatprep.subr.mxu0 0.0
        %593 = vmatpush1.msra.mxu0 0.0
        %594 = vmatprep.subr.mxu0 0.0
        %595 = vmatpush1.msra.mxu0 0.0
        %596 = vmatprep.subr.mxu0 0.0
        %597 = vmatpush1.msra.mxu0 0.0
        %598 = vmatprep.subr.mxu0 0.0
        %599 = vmatpush1.msra.mxu0 0.0
        %600 = vmatprep.subr.mxu0 0.0
        %601 = vmatpush1.msra.mxu0 0.0
        %602 = vmatprep.mubr.f32.mxu0 0.0
        %603 = vmatmul.mubr.f32.gmra.mrb[0].mxu0 %v536
        %v604 = vpop.f32.mrb[0].mxu0
        %v605 = vadd.f32 %v533, %v604
        %v606 = vpop.f32.mrb[0].mxu0
        %607 = vdwg.mxu0
        %v608 = vld [vmem:[%s383] sm:$0xff]
        %s609 = scalar_lea.vmem [#allocation10], 64
        %v610 = vld [vmem:[%s609] sm:$0xff]
        %v611 = vld [vmem:[%s609 + $0x8] sm:$0xff]
        %v612 = vld [vmem:[%s609 + $0x10] sm:$0xff]
        %v613 = vld [vmem:[%s609 + $0x18] sm:$0xff]
        %s614 = scalar_lea.vmem %s5, 2
        %v615 = vld [vmem:[%s614] sm:$0x1]
        %v617 = vlaneseq
        %v618 = vshrl.u32 %v617, 7
        %v619 = vsub.s32 0, %v618
        %v620 = vrot.slane %v615, %v619
        %v623 = vsel %vm447, %v608, 0
        %625 = vmatprep.subr.mxu0 0.0
        %626 = vmatpush1.msra.mxu0 %v610
        %627 = vmatprep.subr.mxu0 0.0
        %628 = vmatpush1.msra.mxu0 %v611
        %629 = vmatprep.subr.mxu0 0.0
        %630 = vmatpush1.msra.mxu0 %v612
        %631 = vmatprep.subr.mxu0 0.0
        %632 = vmatpush1.msra.mxu0 %v613
        %633 = vmatprep.subr.mxu0 0.0
        %634 = vmatpush1.msra.mxu0 0.0
        %635 = vmatprep.subr.mxu0 0.0
        %636 = vmatpush1.msra.mxu0 0.0
        %637 = vmatprep.subr.mxu0 0.0
        %638 = vmatpush1.msra.mxu0 0.0
        %639 = vmatprep.subr.mxu0 0.0
        %640 = vmatpush1.msra.mxu0 0.0
        %641 = vmatprep.subr.mxu0 0.0
        %642 = vmatpush1.msra.mxu0 0.0
        %643 = vmatprep.subr.mxu0 0.0
        %644 = vmatpush1.msra.mxu0 0.0
        %645 = vmatprep.subr.mxu0 0.0
        %646 = vmatpush1.msra.mxu0 0.0
        %647 = vmatprep.subr.mxu0 0.0
        %648 = vmatpush1.msra.mxu0 0.0
        %649 = vmatprep.subr.mxu0 0.0
        %650 = vmatpush1.msra.mxu0 0.0
        %651 = vmatprep.subr.mxu0 0.0
        %652 = vmatpush1.msra.mxu0 0.0
        %653 = vmatprep.subr.mxu0 0.0
        %654 = vmatpush1.msra.mxu0 0.0
        %655 = vmatprep.subr.mxu0 0.0
        %656 = vmatpush1.msra.mxu0 0.0
        %657 = vmatprep.subr.mxu0 0.0
        %658 = vmatpush1.msra.mxu0 0.0
        %659 = vmatprep.subr.mxu0 0.0
        %660 = vmatpush1.msra.mxu0 0.0
        %661 = vmatprep.subr.mxu0 0.0
        %662 = vmatpush1.msra.mxu0 0.0
        %663 = vmatprep.subr.mxu0 0.0
        %664 = vmatpush1.msra.mxu0 0.0
        %665 = vmatprep.subr.mxu0 0.0
        %666 = vmatpush1.msra.mxu0 0.0
        %667 = vmatprep.subr.mxu0 0.0
        %668 = vmatpush1.msra.mxu0 0.0
        %669 = vmatprep.subr.mxu0 0.0
        %670 = vmatpush1.msra.mxu0 0.0
        %671 = vmatprep.subr.mxu0 0.0
        %672 = vmatpush1.msra.mxu0 0.0
        %673 = vmatprep.subr.mxu0 0.0
        %674 = vmatpush1.msra.mxu0 0.0
        %675 = vmatprep.subr.mxu0 0.0
        %676 = vmatpush1.msra.mxu0 0.0
        %677 = vmatprep.subr.mxu0 0.0
        %678 = vmatpush1.msra.mxu0 0.0
        %679 = vmatprep.subr.mxu0 0.0
        %680 = vmatpush1.msra.mxu0 0.0
        %681 = vmatprep.subr.mxu0 0.0
        %682 = vmatpush1.msra.mxu0 0.0
        %683 = vmatprep.subr.mxu0 0.0
        %684 = vmatpush1.msra.mxu0 0.0
        %685 = vmatprep.subr.mxu0 0.0
        %686 = vmatpush1.msra.mxu0 0.0
        %687 = vmatprep.subr.mxu0 0.0
        %688 = vmatpush1.msra.mxu0 0.0
        %689 = vmatprep.mubr.f32.mxu0 0.0
        %690 = vmatmul.mubr.f32.gmra.mrb[0].mxu0 %v623
        %v691 = vpop.f32.mrb[0].mxu0
        %v692 = vadd.f32 %v620, %v691
        %v693 = vpop.f32.mrb[0].mxu0
        %694 = vdwg.mxu0
        %vm695 = vcmask 64512
        %v697 = vsel %vm695, %v518, 0
        %v700 = vsel %vm695, %v605, 0
        %702 = vmatprep.subr.mxu0 0.0
        %703 = vmatpush1.xpose.msra.mxu0 %v700
        %704 = vmatprep.subr.mxu0 0.0
        %705 = vmatpush1.xpose.msra.mxu0 0.0
        %706 = vmatprep.subr.mxu0 0.0
        %707 = vmatpush1.xpose.msra.mxu0 0.0
        %708 = vmatprep.subr.mxu0 0.0
        %709 = vmatpush1.xpose.msra.mxu0 0.0
        %710 = vmatprep.subr.mxu0 0.0
        %711 = vmatpush1.xpose.msra.mxu0 0.0
        %712 = vmatprep.subr.mxu0 0.0
        %713 = vmatpush1.xpose.msra.mxu0 0.0
        %714 = vmatprep.subr.mxu0 0.0
        %715 = vmatpush1.xpose.msra.mxu0 0.0
        %716 = vmatprep.subr.mxu0 0.0
        %717 = vmatpush1.xpose.msra.mxu0 0.0
        %718 = vmatprep.subr.mxu0 0.0
        %719 = vmatpush1.xpose.msra.mxu0 0.0
        %720 = vmatprep.subr.mxu0 0.0
        %721 = vmatpush1.xpose.msra.mxu0 0.0
        %722 = vmatprep.subr.mxu0 0.0
        %723 = vmatpush1.xpose.msra.mxu0 0.0
        %724 = vmatprep.subr.mxu0 0.0
        %725 = vmatpush1.xpose.msra.mxu0 0.0
        %726 = vmatprep.subr.mxu0 0.0
        %727 = vmatpush1.xpose.msra.mxu0 0.0
        %728 = vmatprep.subr.mxu0 0.0
        %729 = vmatpush1.xpose.msra.mxu0 0.0
        %730 = vmatprep.subr.mxu0 0.0
        %731 = vmatpush1.xpose.msra.mxu0 0.0
        %732 = vmatprep.subr.mxu0 0.0
        %733 = vmatpush1.xpose.msra.mxu0 0.0
        %734 = vmatprep.subr.mxu0 0.0
        %735 = vmatpush1.xpose.msra.mxu0 0.0
        %736 = vmatprep.subr.mxu0 0.0
        %737 = vmatpush1.xpose.msra.mxu0 0.0
        %738 = vmatprep.subr.mxu0 0.0
        %739 = vmatpush1.xpose.msra.mxu0 0.0
        %740 = vmatprep.subr.mxu0 0.0
        %741 = vmatpush1.xpose.msra.mxu0 0.0
        %742 = vmatprep.subr.mxu0 0.0
        %743 = vmatpush1.xpose.msra.mxu0 0.0
        %744 = vmatprep.subr.mxu0 0.0
        %745 = vmatpush1.xpose.msra.mxu0 0.0
        %746 = vmatprep.subr.mxu0 0.0
        %747 = vmatpush1.xpose.msra.mxu0 0.0
        %748 = vmatprep.subr.mxu0 0.0
        %749 = vmatpush1.xpose.msra.mxu0 0.0
        %750 = vmatprep.subr.mxu0 0.0
        %751 = vmatpush1.xpose.msra.mxu0 0.0
        %752 = vmatprep.subr.mxu0 0.0
        %753 = vmatpush1.xpose.msra.mxu0 0.0
        %754 = vmatprep.subr.mxu0 0.0
        %755 = vmatpush1.xpose.msra.mxu0 0.0
        %756 = vmatprep.subr.mxu0 0.0
        %757 = vmatpush1.xpose.msra.mxu0 0.0
        %758 = vmatprep.subr.mxu0 0.0
        %759 = vmatpush1.xpose.msra.mxu0 0.0
        %760 = vmatprep.subr.mxu0 0.0
        %761 = vmatpush1.xpose.msra.mxu0 0.0
        %762 = vmatprep.subr.mxu0 0.0
        %763 = vmatpush1.xpose.msra.mxu0 0.0
        %764 = vmatprep.subr.mxu0 0.0
        %765 = vmatpush1.xpose.msra.mxu0 0.0
        %766 = vmatprep.mubr.f32.mxu0 0.0
        %767 = vmatmul.mubr.f32.gmra.mrb[0].mxu0 %v697
        %v768 = vpop.f32.mrb[0].mxu0
        %v769 = vadd.f32 0.0, %v768
        %v770 = vpop.f32.mrb[0].mxu0
        %771 = vdwg.mxu0
        %v772 = vmul.f32 %v769, %v434
        %v774 = vsel %vm695, %v772, 0
        %776 = vmatprep.subr.mxu0 0.0
        %777 = vmatpush1.msra.mxu0 %v692
        %778 = vmatprep.subr.mxu0 0.0
        %779 = vmatpush1.msra.mxu0 0.0
        %780 = vmatprep.subr.mxu0 0.0
        %781 = vmatpush1.msra.mxu0 0.0
        %782 = vmatprep.subr.mxu0 0.0
        %783 = vmatpush1.msra.mxu0 0.0
        %784 = vmatprep.subr.mxu0 0.0
        %785 = vmatpush1.msra.mxu0 0.0
        %786 = vmatprep.subr.mxu0 0.0
        %787 = vmatpush1.msra.mxu0 0.0
        %788 = vmatprep.subr.mxu0 0.0
        %789 = vmatpush1.msra.mxu0 0.0
        %790 = vmatprep.subr.mxu0 0.0
        %791 = vmatpush1.msra.mxu0 0.0
        %792 = vmatprep.subr.mxu0 0.0
        %793 = vmatpush1.msra.mxu0 0.0
        %794 = vmatprep.subr.mxu0 0.0
        %795 = vmatpush1.msra.mxu0 0.0
        %796 = vmatprep.subr.mxu0 0.0
        %797 = vmatpush1.msra.mxu0 0.0
        %798 = vmatprep.subr.mxu0 0.0
        %799 = vmatpush1.msra.mxu0 0.0
        %800 = vmatprep.subr.mxu0 0.0
        %801 = vmatpush1.msra.mxu0 0.0
        %802 = vmatprep.subr.mxu0 0.0
        %803 = vmatpush1.msra.mxu0 0.0
        %804 = vmatprep.subr.mxu0 0.0
        %805 = vmatpush1.msra.mxu0 0.0
        %806 = vmatprep.subr.mxu0 0.0
        %807 = vmatpush1.msra.mxu0 0.0
        %808 = vmatprep.subr.mxu0 0.0
        %809 = vmatpush1.msra.mxu0 0.0
        %810 = vmatprep.subr.mxu0 0.0
        %811 = vmatpush1.msra.mxu0 0.0
        %812 = vmatprep.subr.mxu0 0.0
        %813 = vmatpush1.msra.mxu0 0.0
        %814 = vmatprep.subr.mxu0 0.0
        %815 = vmatpush1.msra.mxu0 0.0
        %816 = vmatprep.subr.mxu0 0.0
        %817 = vmatpush1.msra.mxu0 0.0
        %818 = vmatprep.subr.mxu0 0.0
        %819 = vmatpush1.msra.mxu0 0.0
        %820 = vmatprep.subr.mxu0 0.0
        %821 = vmatpush1.msra.mxu0 0.0
        %822 = vmatprep.subr.mxu0 0.0
        %823 = vmatpush1.msra.mxu0 0.0
        %824 = vmatprep.subr.mxu0 0.0
        %825 = vmatpush1.msra.mxu0 0.0
        %826 = vmatprep.subr.mxu0 0.0
        %827 = vmatpush1.msra.mxu0 0.0
        %828 = vmatprep.subr.mxu0 0.0
        %829 = vmatpush1.msra.mxu0 0.0
        %830 = vmatprep.subr.mxu0 0.0
        %831 = vmatpush1.msra.mxu0 0.0
        %832 = vmatprep.subr.mxu0 0.0
        %833 = vmatpush1.msra.mxu0 0.0
        %834 = vmatprep.subr.mxu0 0.0
        %835 = vmatpush1.msra.mxu0 0.0
        %836 = vmatprep.subr.mxu0 0.0
        %837 = vmatpush1.msra.mxu0 0.0
        %838 = vmatprep.subr.mxu0 0.0
        %839 = vmatpush1.msra.mxu0 0.0
        %840 = vmatprep.mubr.f32.mxu0 0.0
        %841 = vmatmul.mubr.f32.gmra.mrb[0].mxu0 %v774
        %v842 = vpop.f32.mrb[0].mxu0
        %v843 = vadd.f32 0.0, %v842
        %v844 = vpop.f32.mrb[0].mxu0
        %845 = vdwg.mxu0
        %v846 = vld [vmem:[#allocation11] sm:$0xff]
        %847 = vrot.lane.b32.xlu0 %v518, 120
        %v848 = vpop.permute.xlu0 %847
        %849 = vrot.lane.b32.xlu0 %v605, 120
        %v850 = vpop.permute.xlu0 %849
        %v851 = vsel %vm695, %v848, 0
        %v853 = vsel %vm695, %v850, 0
        %855 = vmatprep.subr.mxu0 0.0
        %856 = vmatpush1.xpose.msra.mxu0 %v853
        %857 = vmatprep.subr.mxu0 0.0
        %858 = vmatpush1.xpose.msra.mxu0 0.0
        %859 = vmatprep.subr.mxu0 0.0
        %860 = vmatpush1.xpose.msra.mxu0 0.0
        %861 = vmatprep.subr.mxu0 0.0
        %862 = vmatpush1.xpose.msra.mxu0 0.0
        %863 = vmatprep.subr.mxu0 0.0
        %864 = vmatpush1.xpose.msra.mxu0 0.0
        %865 = vmatprep.subr.mxu0 0.0
        %866 = vmatpush1.xpose.msra.mxu0 0.0
        %867 = vmatprep.subr.mxu0 0.0
        %868 = vmatpush1.xpose.msra.mxu0 0.0
        %869 = vmatprep.subr.mxu0 0.0
        %870 = vmatpush1.xpose.msra.mxu0 0.0
        %871 = vmatprep.subr.mxu0 0.0
        %872 = vmatpush1.xpose.msra.mxu0 0.0
        %873 = vmatprep.subr.mxu0 0.0
        %874 = vmatpush1.xpose.msra.mxu0 0.0
        %875 = vmatprep.subr.mxu0 0.0
        %876 = vmatpush1.xpose.msra.mxu0 0.0
        %877 = vmatprep.subr.mxu0 0.0
        %878 = vmatpush1.xpose.msra.mxu0 0.0
        %879 = vmatprep.subr.mxu0 0.0
        %880 = vmatpush1.xpose.msra.mxu0 0.0
        %881 = vmatprep.subr.mxu0 0.0
        %882 = vmatpush1.xpose.msra.mxu0 0.0
        %883 = vmatprep.subr.mxu0 0.0
        %884 = vmatpush1.xpose.msra.mxu0 0.0
        %885 = vmatprep.subr.mxu0 0.0
        %886 = vmatpush1.xpose.msra.mxu0 0.0
        %887 = vmatprep.subr.mxu0 0.0
        %888 = vmatpush1.xpose.msra.mxu0 0.0
        %889 = vmatprep.subr.mxu0 0.0
        %890 = vmatpush1.xpose.msra.mxu0 0.0
        %891 = vmatprep.subr.mxu0 0.0
        %892 = vmatpush1.xpose.msra.mxu0 0.0
        %893 = vmatprep.subr.mxu0 0.0
        %894 = vmatpush1.xpose.msra.mxu0 0.0
        %895 = vmatprep.subr.mxu0 0.0
        %896 = vmatpush1.xpose.msra.mxu0 0.0
        %897 = vmatprep.subr.mxu0 0.0
        %898 = vmatpush1.xpose.msra.mxu0 0.0
        %899 = vmatprep.subr.mxu0 0.0
        %900 = vmatpush1.xpose.msra.mxu0 0.0
        %901 = vmatprep.subr.mxu0 0.0
        %902 = vmatpush1.xpose.msra.mxu0 0.0
        %903 = vmatprep.subr.mxu0 0.0
        %904 = vmatpush1.xpose.msra.mxu0 0.0
        %905 = vmatprep.subr.mxu0 0.0
        %906 = vmatpush1.xpose.msra.mxu0 0.0
        %907 = vmatprep.subr.mxu0 0.0
        %908 = vmatpush1.xpose.msra.mxu0 0.0
        %909 = vmatprep.subr.mxu0 0.0
        %910 = vmatpush1.xpose.msra.mxu0 0.0
        %911 = vmatprep.subr.mxu0 0.0
        %912 = vmatpush1.xpose.msra.mxu0 0.0
        %913 = vmatprep.subr.mxu0 0.0
        %914 = vmatpush1.xpose.msra.mxu0 0.0
        %915 = vmatprep.subr.mxu0 0.0
        %916 = vmatpush1.xpose.msra.mxu0 0.0
        %917 = vmatprep.subr.mxu0 0.0
        %918 = vmatpush1.xpose.msra.mxu0 0.0
        %919 = vmatprep.mubr.f32.mxu0 0.0
        %920 = vmatmul.mubr.f32.gmra.mrb[0].mxu0 %v851
        %v921 = vpop.f32.mrb[0].mxu0
        %v922 = vadd.f32 0.0, %v921
        %v923 = vpop.f32.mrb[0].mxu0
        %924 = vdwg.mxu0
        %v925 = vmul.f32 %v922, %v434
        %927 = vrot.lane.b32.xlu0 %v692, 120
        %v928 = vpop.permute.xlu0 %927
        %v931 = vsel %vm695, %v925, 0
        %933 = vmatprep.subr.mxu0 0.0
        %934 = vmatpush1.msra.mxu0 %v928
        %935 = vmatprep.subr.mxu0 0.0
        %936 = vmatpush1.msra.mxu0 0.0
        %937 = vmatprep.subr.mxu0 0.0
        %938 = vmatpush1.msra.mxu0 0.0
        %939 = vmatprep.subr.mxu0 0.0
        %940 = vmatpush1.msra.mxu0 0.0
        %941 = vmatprep.subr.mxu0 0.0
        %942 = vmatpush1.msra.mxu0 0.0
        %943 = vmatprep.subr.mxu0 0.0
        %944 = vmatpush1.msra.mxu0 0.0
        %945 = vmatprep.subr.mxu0 0.0
        %946 = vmatpush1.msra.mxu0 0.0
        %947 = vmatprep.subr.mxu0 0.0
        %948 = vmatpush1.msra.mxu0 0.0
        %949 = vmatprep.subr.mxu0 0.0
        %950 = vmatpush1.msra.mxu0 0.0
        %951 = vmatprep.subr.mxu0 0.0
        %952 = vmatpush1.msra.mxu0 0.0
        %953 = vmatprep.subr.mxu0 0.0
        %954 = vmatpush1.msra.mxu0 0.0
        %955 = vmatprep.subr.mxu0 0.0
        %956 = vmatpush1.msra.mxu0 0.0
        %957 = vmatprep.subr.mxu0 0.0
        %958 = vmatpush1.msra.mxu0 0.0
        %959 = vmatprep.subr.mxu0 0.0
        %960 = vmatpush1.msra.mxu0 0.0
        %961 = vmatprep.subr.mxu0 0.0
        %962 = vmatpush1.msra.mxu0 0.0
        %963 = vmatprep.subr.mxu0 0.0
        %964 = vmatpush1.msra.mxu0 0.0
        %965 = vmatprep.subr.mxu0 0.0
        %966 = vmatpush1.msra.mxu0 0.0
        %967 = vmatprep.subr.mxu0 0.0
        %968 = vmatpush1.msra.mxu0 0.0
        %969 = vmatprep.subr.mxu0 0.0
        %970 = vmatpush1.msra.mxu0 0.0
        %971 = vmatprep.subr.mxu0 0.0
        %972 = vmatpush1.msra.mxu0 0.0
        %973 = vmatprep.subr.mxu0 0.0
        %974 = vmatpush1.msra.mxu0 0.0
        %975 = vmatprep.subr.mxu0 0.0
        %976 = vmatpush1.msra.mxu0 0.0
        %977 = vmatprep.subr.mxu0 0.0
        %978 = vmatpush1.msra.mxu0 0.0
        %979 = vmatprep.subr.mxu0 0.0
        %980 = vmatpush1.msra.mxu0 0.0
        %981 = vmatprep.subr.mxu0 0.0
        %982 = vmatpush1.msra.mxu0 0.0
        %983 = vmatprep.subr.mxu0 0.0
        %984 = vmatpush1.msra.mxu0 0.0
        %985 = vmatprep.subr.mxu0 0.0
        %986 = vmatpush1.msra.mxu0 0.0
        %987 = vmatprep.subr.mxu0 0.0
        %988 = vmatpush1.msra.mxu0 0.0
        %989 = vmatprep.subr.mxu0 0.0
        %990 = vmatpush1.msra.mxu0 0.0
        %991 = vmatprep.subr.mxu0 0.0
        %992 = vmatpush1.msra.mxu0 0.0
        %993 = vmatprep.subr.mxu0 0.0
        %994 = vmatpush1.msra.mxu0 0.0
        %995 = vmatprep.subr.mxu0 0.0
        %996 = vmatpush1.msra.mxu0 0.0
        %997 = vmatprep.mubr.f32.mxu0 0.0
        %998 = vmatmul.mubr.f32.gmra.mrb[0].mxu0 %v931
        %v999 = vpop.f32.mrb[0].mxu0
        %v1000 = vadd.f32 0.0, %v999
        %v1001 = vpop.f32.mrb[0].mxu0
        %1002 = vdwg.mxu0
        %s1003 = scalar_lea.vmem [#allocation11], 8
        %v1004 = vld [vmem:[%s1003] sm:$0xff]
        %v1006 = vsel %vm695, %v1000, 0
        %1008 = vmatprep.subr.mxu0 0.0
        %1009 = vmatpush1.msra.mxu0 %v1004
        %1010 = vmatprep.subr.mxu0 0.0
        %1011 = vmatpush1.msra.mxu0 0.0
        %1012 = vmatprep.subr.mxu0 0.0
        %1013 = vmatpush1.msra.mxu0 0.0
        %1014 = vmatprep.subr.mxu0 0.0
        %1015 = vmatpush1.msra.mxu0 0.0
        %1016 = vmatprep.subr.mxu0 0.0
        %1017 = vmatpush1.msra.mxu0 0.0
        %1018 = vmatprep.subr.mxu0 0.0
        %1019 = vmatpush1.msra.mxu0 0.0
        %1020 = vmatprep.subr.mxu0 0.0
        %1021 = vmatpush1.msra.mxu0 0.0
        %1022 = vmatprep.subr.mxu0 0.0
        %1023 = vmatpush1.msra.mxu0 0.0
        %1024 = vmatprep.subr.mxu0 0.0
        %1025 = vmatpush1.msra.mxu0 0.0
        %1026 = vmatprep.subr.mxu0 0.0
        %1027 = vmatpush1.msra.mxu0 0.0
        %1028 = vmatprep.subr.mxu0 0.0
        %1029 = vmatpush1.msra.mxu0 0.0
        %1030 = vmatprep.subr.mxu0 0.0
        %1031 = vmatpush1.msra.mxu0 0.0
        %1032 = vmatprep.subr.mxu0 0.0
        %1033 = vmatpush1.msra.mxu0 0.0
        %1034 = vmatprep.subr.mxu0 0.0
        %1035 = vmatpush1.msra.mxu0 0.0
        %1036 = vmatprep.subr.mxu0 0.0
        %1037 = vmatpush1.msra.mxu0 0.0
        %1038 = vmatprep.subr.mxu0 0.0
        %1039 = vmatpush1.msra.mxu0 0.0
        %1040 = vmatprep.subr.mxu0 0.0
        %1041 = vmatpush1.msra.mxu0 0.0
        %1042 = vmatprep.subr.mxu0 0.0
        %1043 = vmatpush1.msra.mxu0 0.0
        %1044 = vmatprep.subr.mxu0 0.0
        %1045 = vmatpush1.msra.mxu0 0.0
        %1046 = vmatprep.subr.mxu0 0.0
        %1047 = vmatpush1.msra.mxu0 0.0
        %1048 = vmatprep.subr.mxu0 0.0
        %1049 = vmatpush1.msra.mxu0 0.0
        %1050 = vmatprep.subr.mxu0 0.0
        %1051 = vmatpush1.msra.mxu0 0.0
        %1052 = vmatprep.subr.mxu0 0.0
        %1053 = vmatpush1.msra.mxu0 0.0
        %1054 = vmatprep.subr.mxu0 0.0
        %1055 = vmatpush1.msra.mxu0 0.0
        %1056 = vmatprep.subr.mxu0 0.0
        %1057 = vmatpush1.msra.mxu0 0.0
        %1058 = vmatprep.subr.mxu0 0.0
        %1059 = vmatpush1.msra.mxu0 0.0
        %1060 = vmatprep.subr.mxu0 0.0
        %1061 = vmatpush1.msra.mxu0 0.0
        %1062 = vmatprep.subr.mxu0 0.0
        %1063 = vmatpush1.msra.mxu0 0.0
        %1064 = vmatprep.subr.mxu0 0.0
        %1065 = vmatpush1.msra.mxu0 0.0
        %1066 = vmatprep.subr.mxu0 0.0
        %1067 = vmatpush1.msra.mxu0 0.0
        %1068 = vmatprep.subr.mxu0 0.0
        %1069 = vmatpush1.msra.mxu0 0.0
        %1070 = vmatprep.subr.mxu0 0.0
        %1071 = vmatpush1.msra.mxu0 0.0
        %1072 = vmatprep.mubr.f32.mxu0 0.0
        %1073 = vmatmul.mubr.f32.gmra.mrb[0].mxu0 %v1006
        %v1074 = vpop.f32.mrb[0].mxu0
        %v1075 = vadd.f32 0.0, %v1074
        %v1076 = vpop.f32.mrb[0].mxu0
        %1077 = vdwg.mxu0
        %v1079 = vsel %vm695, %v843, 0
        %1081 = vmatprep.subr.mxu0 0.0
        %1082 = vmatpush1.msra.mxu0 %v846
        %1083 = vmatprep.subr.mxu0 0.0
        %1084 = vmatpush1.msra.mxu0 0.0
        %1085 = vmatprep.subr.mxu0 0.0
        %1086 = vmatpush1.msra.mxu0 0.0
        %1087 = vmatprep.subr.mxu0 0.0
        %1088 = vmatpush1.msra.mxu0 0.0
        %1089 = vmatprep.subr.mxu0 0.0
        %1090 = vmatpush1.msra.mxu0 0.0
        %1091 = vmatprep.subr.mxu0 0.0
        %1092 = vmatpush1.msra.mxu0 0.0
        %1093 = vmatprep.subr.mxu0 0.0
        %1094 = vmatpush1.msra.mxu0 0.0
        %1095 = vmatprep.subr.mxu0 0.0
        %1096 = vmatpush1.msra.mxu0 0.0
        %1097 = vmatprep.subr.mxu0 0.0
        %1098 = vmatpush1.msra.mxu0 0.0
        %1099 = vmatprep.subr.mxu0 0.0
        %1100 = vmatpush1.msra.mxu0 0.0
        %1101 = vmatprep.subr.mxu0 0.0
        %1102 = vmatpush1.msra.mxu0 0.0
        %1103 = vmatprep.subr.mxu0 0.0
        %1104 = vmatpush1.msra.mxu0 0.0
        %1105 = vmatprep.subr.mxu0 0.0
        %1106 = vmatpush1.msra.mxu0 0.0
        %1107 = vmatprep.subr.mxu0 0.0
        %1108 = vmatpush1.msra.mxu0 0.0
        %1109 = vmatprep.subr.mxu0 0.0
        %1110 = vmatpush1.msra.mxu0 0.0
        %1111 = vmatprep.subr.mxu0 0.0
        %1112 = vmatpush1.msra.mxu0 0.0
        %1113 = vmatprep.subr.mxu0 0.0
        %1114 = vmatpush1.msra.mxu0 0.0
        %1115 = vmatprep.subr.mxu0 0.0
        %1116 = vmatpush1.msra.mxu0 0.0
        %1117 = vmatprep.subr.mxu0 0.0
        %1118 = vmatpush1.msra.mxu0 0.0
        %1119 = vmatprep.subr.mxu0 0.0
        %1120 = vmatpush1.msra.mxu0 0.0
        %1121 = vmatprep.subr.mxu0 0.0
        %1122 = vmatpush1.msra.mxu0 0.0
        %1123 = vmatprep.subr.mxu0 0.0
        %1124 = vmatpush1.msra.mxu0 0.0
        %1125 = vmatprep.subr.mxu0 0.0
        %1126 = vmatpush1.msra.mxu0 0.0
        %1127 = vmatprep.subr.mxu0 0.0
        %1128 = vmatpush1.msra.mxu0 0.0
        %1129 = vmatprep.subr.mxu0 0.0
        %1130 = vmatpush1.msra.mxu0 0.0
        %1131 = vmatprep.subr.mxu0 0.0
        %1132 = vmatpush1.msra.mxu0 0.0
        %1133 = vmatprep.subr.mxu0 0.0
        %1134 = vmatpush1.msra.mxu0 0.0
        %1135 = vmatprep.subr.mxu0 0.0
        %1136 = vmatpush1.msra.mxu0 0.0
        %1137 = vmatprep.subr.mxu0 0.0
        %1138 = vmatpush1.msra.mxu0 0.0
        %1139 = vmatprep.subr.mxu0 0.0
        %1140 = vmatpush1.msra.mxu0 0.0
        %1141 = vmatprep.subr.mxu0 0.0
        %1142 = vmatpush1.msra.mxu0 0.0
        %1143 = vmatprep.subr.mxu0 0.0
        %1144 = vmatpush1.msra.mxu0 0.0
        %1145 = vmatprep.mubr.f32.mxu0 0.0
        %1146 = vmatmul.mubr.f32.gmra.mrb[0].mxu0 %v1079
        %v1147 = vpop.f32.mrb[0].mxu0
        %v1148 = vadd.f32 %v1075, %v1147
        %v1149 = vpop.f32.mrb[0].mxu0
        %1150 = vdwg.mxu0
        %1151 = vrot.lane.b32.xlu0 %v518, 112
        %v1152 = vpop.permute.xlu0 %1151
        %1153 = vrot.lane.b32.xlu0 %v605, 112
        %v1154 = vpop.permute.xlu0 %1153
        %v1155 = vsel %vm695, %v1152, 0
        %v1157 = vsel %vm695, %v1154, 0
        %1159 = vmatprep.subr.mxu0 0.0
        %1160 = vmatpush1.xpose.msra.mxu0 %v1157
        %1161 = vmatprep.subr.mxu0 0.0
        %1162 = vmatpush1.xpose.msra.mxu0 0.0
        %1163 = vmatprep.subr.mxu0 0.0
        %1164 = vmatpush1.xpose.msra.mxu0 0.0
        %1165 = vmatprep.subr.mxu0 0.0
        %1166 = vmatpush1.xpose.msra.mxu0 0.0
        %1167 = vmatprep.subr.mxu0 0.0
        %1168 = vmatpush1.xpose.msra.mxu0 0.0
        %1169 = vmatprep.subr.mxu0 0.0
        %1170 = vmatpush1.xpose.msra.mxu0 0.0
        %1171 = vmatprep.subr.mxu0 0.0
        %1172 = vmatpush1.xpose.msra.mxu0 0.0
        %1173 = vmatprep.subr.mxu0 0.0
        %1174 = vmatpush1.xpose.msra.mxu0 0.0
        %1175 = vmatprep.subr.mxu0 0.0
        %1176 = vmatpush1.xpose.msra.mxu0 0.0
        %1177 = vmatprep.subr.mxu0 0.0
        %1178 = vmatpush1.xpose.msra.mxu0 0.0
        %1179 = vmatprep.subr.mxu0 0.0
        %1180 = vmatpush1.xpose.msra.mxu0 0.0
        %1181 = vmatprep.subr.mxu0 0.0
        %1182 = vmatpush1.xpose.msra.mxu0 0.0
        %1183 = vmatprep.subr.mxu0 0.0
        %1184 = vmatpush1.xpose.msra.mxu0 0.0
        %1185 = vmatprep.subr.mxu0 0.0
        %1186 = vmatpush1.xpose.msra.mxu0 0.0
        %1187 = vmatprep.subr.mxu0 0.0
        %1188 = vmatpush1.xpose.msra.mxu0 0.0
        %1189 = vmatprep.subr.mxu0 0.0
        %1190 = vmatpush1.xpose.msra.mxu0 0.0
        %1191 = vmatprep.subr.mxu0 0.0
        %1192 = vmatpush1.xpose.msra.mxu0 0.0
        %1193 = vmatprep.subr.mxu0 0.0
        %1194 = vmatpush1.xpose.msra.mxu0 0.0
        %1195 = vmatprep.subr.mxu0 0.0
        %1196 = vmatpush1.xpose.msra.mxu0 0.0
        %1197 = vmatprep.subr.mxu0 0.0
        %1198 = vmatpush1.xpose.msra.mxu0 0.0
        %1199 = vmatprep.subr.mxu0 0.0
        %1200 = vmatpush1.xpose.msra.mxu0 0.0
        %1201 = vmatprep.subr.mxu0 0.0
        %1202 = vmatpush1.xpose.msra.mxu0 0.0
        %1203 = vmatprep.subr.mxu0 0.0
        %1204 = vmatpush1.xpose.msra.mxu0 0.0
        %1205 = vmatprep.subr.mxu0 0.0
        %1206 = vmatpush1.xpose.msra.mxu0 0.0
        %1207 = vmatprep.subr.mxu0 0.0
        %1208 = vmatpush1.xpose.msra.mxu0 0.0
        %1209 = vmatprep.subr.mxu0 0.0
        %1210 = vmatpush1.xpose.msra.mxu0 0.0
        %1211 = vmatprep.subr.mxu0 0.0
        %1212 = vmatpush1.xpose.msra.mxu0 0.0
        %1213 = vmatprep.subr.mxu0 0.0
        %1214 = vmatpush1.xpose.msra.mxu0 0.0
        %1215 = vmatprep.subr.mxu0 0.0
        %1216 = vmatpush1.xpose.msra.mxu0 0.0
        %1217 = vmatprep.subr.mxu0 0.0
        %1218 = vmatpush1.xpose.msra.mxu0 0.0
        %1219 = vmatprep.subr.mxu0 0.0
        %1220 = vmatpush1.xpose.msra.mxu0 0.0
        %1221 = vmatprep.subr.mxu0 0.0
        %1222 = vmatpush1.xpose.msra.mxu0 0.0
        %1223 = vmatprep.mubr.f32.mxu0 0.0
        %1224 = vmatmul.mubr.f32.gmra.mrb[0].mxu0 %v1155
        %v1225 = vpop.f32.mrb[0].mxu0
        %v1226 = vadd.f32 0.0, %v1225
        %v1227 = vpop.f32.mrb[0].mxu0
        %1228 = vdwg.mxu0
        %v1229 = vmul.f32 %v1226, %v434
        %1230 = vrot.lane.b32.xlu0 %v692, 112
        %v1231 = vpop.permute.xlu0 %1230
        %v1234 = vsel %vm695, %v1229, 0
        %1236 = vmatprep.subr.mxu0 0.0
        %1237 = vmatpush1.msra.mxu0 %v1231
        %1238 = vmatprep.subr.mxu0 0.0
        %1239 = vmatpush1.msra.mxu0 0.0
        %1240 = vmatprep.subr.mxu0 0.0
        %1241 = vmatpush1.msra.mxu0 0.0
        %1242 = vmatprep.subr.mxu0 0.0
        %1243 = vmatpush1.msra.mxu0 0.0
        %1244 = vmatprep.subr.mxu0 0.0
        %1245 = vmatpush1.msra.mxu0 0.0
        %1246 = vmatprep.subr.mxu0 0.0
        %1247 = vmatpush1.msra.mxu0 0.0
        %1248 = vmatprep.subr.mxu0 0.0
        %1249 = vmatpush1.msra.mxu0 0.0
        %1250 = vmatprep.subr.mxu0 0.0
        %1251 = vmatpush1.msra.mxu0 0.0
        %1252 = vmatprep.subr.mxu0 0.0
        %1253 = vmatpush1.msra.mxu0 0.0
        %1254 = vmatprep.subr.mxu0 0.0
        %1255 = vmatpush1.msra.mxu0 0.0
        %1256 = vmatprep.subr.mxu0 0.0
        %1257 = vmatpush1.msra.mxu0 0.0
        %1258 = vmatprep.subr.mxu0 0.0
        %1259 = vmatpush1.msra.mxu0 0.0
        %1260 = vmatprep.subr.mxu0 0.0
        %1261 = vmatpush1.msra.mxu0 0.0
        %1262 = vmatprep.subr.mxu0 0.0
        %1263 = vmatpush1.msra.mxu0 0.0
        %1264 = vmatprep.subr.mxu0 0.0
        %1265 = vmatpush1.msra.mxu0 0.0
        %1266 = vmatprep.subr.mxu0 0.0
        %1267 = vmatpush1.msra.mxu0 0.0
        %1268 = vmatprep.subr.mxu0 0.0
        %1269 = vmatpush1.msra.mxu0 0.0
        %1270 = vmatprep.subr.mxu0 0.0
        %1271 = vmatpush1.msra.mxu0 0.0
        %1272 = vmatprep.subr.mxu0 0.0
        %1273 = vmatpush1.msra.mxu0 0.0
        %1274 = vmatprep.subr.mxu0 0.0
        %1275 = vmatpush1.msra.mxu0 0.0
        %1276 = vmatprep.subr.mxu0 0.0
        %1277 = vmatpush1.msra.mxu0 0.0
        %1278 = vmatprep.subr.mxu0 0.0
        %1279 = vmatpush1.msra.mxu0 0.0
        %1280 = vmatprep.subr.mxu0 0.0
        %1281 = vmatpush1.msra.mxu0 0.0
        %1282 = vmatprep.subr.mxu0 0.0
        %1283 = vmatpush1.msra.mxu0 0.0
        %1284 = vmatprep.subr.mxu0 0.0
        %1285 = vmatpush1.msra.mxu0 0.0
        %1286 = vmatprep.subr.mxu0 0.0
        %1287 = vmatpush1.msra.mxu0 0.0
        %1288 = vmatprep.subr.mxu0 0.0
        %1289 = vmatpush1.msra.mxu0 0.0
        %1290 = vmatprep.subr.mxu0 0.0
        %1291 = vmatpush1.msra.mxu0 0.0
        %1292 = vmatprep.subr.mxu0 0.0
        %1293 = vmatpush1.msra.mxu0 0.0
        %1294 = vmatprep.subr.mxu0 0.0
        %1295 = vmatpush1.msra.mxu0 0.0
        %1296 = vmatprep.subr.mxu0 0.0
        %1297 = vmatpush1.msra.mxu0 0.0
        %1298 = vmatprep.subr.mxu0 0.0
        %1299 = vmatpush1.msra.mxu0 0.0
        %1300 = vmatprep.mubr.f32.mxu0 0.0
        %1301 = vmatmul.mubr.f32.gmra.mrb[0].mxu0 %v1234
        %v1302 = vpop.f32.mrb[0].mxu0
        %v1303 = vadd.f32 0.0, %v1302
        %v1304 = vpop.f32.mrb[0].mxu0
        %1305 = vdwg.mxu0
        %s1306 = scalar_lea.vmem [#allocation11], 16
        %v1307 = vld [vmem:[%s1306] sm:$0xff]
        %v1309 = vsel %vm695, %v1303, 0
        %1311 = vmatprep.subr.mxu0 0.0
        %1312 = vmatpush1.msra.mxu0 %v1307
        %1313 = vmatprep.subr.mxu0 0.0
        %1314 = vmatpush1.msra.mxu0 0.0
        %1315 = vmatprep.subr.mxu0 0.0
        %1316 = vmatpush1.msra.mxu0 0.0
        %1317 = vmatprep.subr.mxu0 0.0
        %1318 = vmatpush1.msra.mxu0 0.0
        %1319 = vmatprep.subr.mxu0 0.0
        %1320 = vmatpush1.msra.mxu0 0.0
        %1321 = vmatprep.subr.mxu0 0.0
        %1322 = vmatpush1.msra.mxu0 0.0
        %1323 = vmatprep.subr.mxu0 0.0
        %1324 = vmatpush1.msra.mxu0 0.0
        %1325 = vmatprep.subr.mxu0 0.0
        %1326 = vmatpush1.msra.mxu0 0.0
        %1327 = vmatprep.subr.mxu0 0.0
        %1328 = vmatpush1.msra.mxu0 0.0
        %1329 = vmatprep.subr.mxu0 0.0
        %1330 = vmatpush1.msra.mxu0 0.0
        %1331 = vmatprep.subr.mxu0 0.0
        %1332 = vmatpush1.msra.mxu0 0.0
        %1333 = vmatprep.subr.mxu0 0.0
        %1334 = vmatpush1.msra.mxu0 0.0
        %1335 = vmatprep.subr.mxu0 0.0
        %1336 = vmatpush1.msra.mxu0 0.0
        %1337 = vmatprep.subr.mxu0 0.0
        %1338 = vmatpush1.msra.mxu0 0.0
        %1339 = vmatprep.subr.mxu0 0.0
        %1340 = vmatpush1.msra.mxu0 0.0
        %1341 = vmatprep.subr.mxu0 0.0
        %1342 = vmatpush1.msra.mxu0 0.0
        %1343 = vmatprep.subr.mxu0 0.0
        %1344 = vmatpush1.msra.mxu0 0.0
        %1345 = vmatprep.subr.mxu0 0.0
        %1346 = vmatpush1.msra.mxu0 0.0
        %1347 = vmatprep.subr.mxu0 0.0
        %1348 = vmatpush1.msra.mxu0 0.0
        %1349 = vmatprep.subr.mxu0 0.0
        %1350 = vmatpush1.msra.mxu0 0.0
        %1351 = vmatprep.subr.mxu0 0.0
        %1352 = vmatpush1.msra.mxu0 0.0
        %1353 = vmatprep.subr.mxu0 0.0
        %1354 = vmatpush1.msra.mxu0 0.0
        %1355 = vmatprep.subr.mxu0 0.0
        %1356 = vmatpush1.msra.mxu0 0.0
        %1357 = vmatprep.subr.mxu0 0.0
        %1358 = vmatpush1.msra.mxu0 0.0
        %1359 = vmatprep.subr.mxu0 0.0
        %1360 = vmatpush1.msra.mxu0 0.0
        %1361 = vmatprep.subr.mxu0 0.0
        %1362 = vmatpush1.msra.mxu0 0.0
        %1363 = vmatprep.subr.mxu0 0.0
        %1364 = vmatpush1.msra.mxu0 0.0
        %1365 = vmatprep.subr.mxu0 0.0
        %1366 = vmatpush1.msra.mxu0 0.0
        %1367 = vmatprep.subr.mxu0 0.0
        %1368 = vmatpush1.msra.mxu0 0.0
        %1369 = vmatprep.subr.mxu0 0.0
        %1370 = vmatpush1.msra.mxu0 0.0
        %1371 = vmatprep.subr.mxu0 0.0
        %1372 = vmatpush1.msra.mxu0 0.0
        %1373 = vmatprep.subr.mxu0 0.0
        %1374 = vmatpush1.msra.mxu0 0.0
        %1375 = vmatprep.mubr.f32.mxu0 0.0
        %1376 = vmatmul.mubr.f32.gmra.mrb[0].mxu0 %v1309
        %v1377 = vpop.f32.mrb[0].mxu0
        %v1378 = vadd.f32 0.0, %v1377
        %v1379 = vpop.f32.mrb[0].mxu0
        %1380 = vdwg.mxu0
        %v1381 = vadd.f32 %v1148, %v1378
        %1382 = vrot.lane.b32.xlu0 %v518, 104
        %v1383 = vpop.permute.xlu0 %1382
        %1384 = vrot.lane.b32.xlu0 %v605, 104
        %v1385 = vpop.permute.xlu0 %1384
        %v1386 = vsel %vm695, %v1383, 0
        %v1388 = vsel %vm695, %v1385, 0
        %1390 = vmatprep.subr.mxu0 0.0
        %1391 = vmatpush1.xpose.msra.mxu0 %v1388
        %1392 = vmatprep.subr.mxu0 0.0
        %1393 = vmatpush1.xpose.msra.mxu0 0.0
        %1394 = vmatprep.subr.mxu0 0.0
        %1395 = vmatpush1.xpose.msra.mxu0 0.0
        %1396 = vmatprep.subr.mxu0 0.0
        %1397 = vmatpush1.xpose.msra.mxu0 0.0
        %1398 = vmatprep.subr.mxu0 0.0
        %1399 = vmatpush1.xpose.msra.mxu0 0.0
        %1400 = vmatprep.subr.mxu0 0.0
        %1401 = vmatpush1.xpose.msra.mxu0 0.0
        %1402 = vmatprep.subr.mxu0 0.0
        %1403 = vmatpush1.xpose.msra.mxu0 0.0
        %1404 = vmatprep.subr.mxu0 0.0
        %1405 = vmatpush1.xpose.msra.mxu0 0.0
        %1406 = vmatprep.subr.mxu0 0.0
        %1407 = vmatpush1.xpose.msra.mxu0 0.0
        %1408 = vmatprep.subr.mxu0 0.0
        %1409 = vmatpush1.xpose.msra.mxu0 0.0
        %1410 = vmatprep.subr.mxu0 0.0
        %1411 = vmatpush1.xpose.msra.mxu0 0.0
        %1412 = vmatprep.subr.mxu0 0.0
        %1413 = vmatpush1.xpose.msra.mxu0 0.0
        %1414 = vmatprep.subr.mxu0 0.0
        %1415 = vmatpush1.xpose.msra.mxu0 0.0
        %1416 = vmatprep.subr.mxu0 0.0
        %1417 = vmatpush1.xpose.msra.mxu0 0.0
        %1418 = vmatprep.subr.mxu0 0.0
        %1419 = vmatpush1.xpose.msra.mxu0 0.0
        %1420 = vmatprep.subr.mxu0 0.0
        %1421 = vmatpush1.xpose.msra.mxu0 0.0
        %1422 = vmatprep.subr.mxu0 0.0
        %1423 = vmatpush1.xpose.msra.mxu0 0.0
        %1424 = vmatprep.subr.mxu0 0.0
        %1425 = vmatpush1.xpose.msra.mxu0 0.0
        %1426 = vmatprep.subr.mxu0 0.0
        %1427 = vmatpush1.xpose.msra.mxu0 0.0
        %1428 = vmatprep.subr.mxu0 0.0
        %1429 = vmatpush1.xpose.msra.mxu0 0.0
        %1430 = vmatprep.subr.mxu0 0.0
        %1431 = vmatpush1.xpose.msra.mxu0 0.0
        %1432 = vmatprep.subr.mxu0 0.0
        %1433 = vmatpush1.xpose.msra.mxu0 0.0
        %1434 = vmatprep.subr.mxu0 0.0
        %1435 = vmatpush1.xpose.msra.mxu0 0.0
        %1436 = vmatprep.subr.mxu0 0.0
        %1437 = vmatpush1.xpose.msra.mxu0 0.0
        %1438 = vmatprep.subr.mxu0 0.0
        %1439 = vmatpush1.xpose.msra.mxu0 0.0
        %1440 = vmatprep.subr.mxu0 0.0
        %1441 = vmatpush1.xpose.msra.mxu0 0.0
        %1442 = vmatprep.subr.mxu0 0.0
        %1443 = vmatpush1.xpose.msra.mxu0 0.0
        %1444 = vmatprep.subr.mxu0 0.0
        %1445 = vmatpush1.xpose.msra.mxu0 0.0
        %1446 = vmatprep.subr.mxu0 0.0
        %1447 = vmatpush1.xpose.msra.mxu0 0.0
        %1448 = vmatprep.subr.mxu0 0.0
        %1449 = vmatpush1.xpose.msra.mxu0 0.0
        %1450 = vmatprep.subr.mxu0 0.0
        %1451 = vmatpush1.xpose.msra.mxu0 0.0
        %1452 = vmatprep.subr.mxu0 0.0
        %1453 = vmatpush1.xpose.msra.mxu0 0.0
        %1454 = vmatprep.mubr.f32.mxu0 0.0
        %1455 = vmatmul.mubr.f32.gmra.mrb[0].mxu0 %v1386
        %v1456 = vpop.f32.mrb[0].mxu0
        %v1457 = vadd.f32 0.0, %v1456
        %v1458 = vpop.f32.mrb[0].mxu0
        %1459 = vdwg.mxu0
        %v1460 = vmul.f32 %v1457, %v434
        %1461 = vrot.lane.b32.xlu0 %v692, 104
        %v1462 = vpop.permute.xlu0 %1461
        %v1465 = vsel %vm695, %v1460, 0
        %1467 = vmatprep.subr.mxu0 0.0
        %1468 = vmatpush1.msra.mxu0 %v1462
        %1469 = vmatprep.subr.mxu0 0.0
        %1470 = vmatpush1.msra.mxu0 0.0
        %1471 = vmatprep.subr.mxu0 0.0
        %1472 = vmatpush1.msra.mxu0 0.0
        %1473 = vmatprep.subr.mxu0 0.0
        %1474 = vmatpush1.msra.mxu0 0.0
        %1475 = vmatprep.subr.mxu0 0.0
        %1476 = vmatpush1.msra.mxu0 0.0
        %1477 = vmatprep.subr.mxu0 0.0
        %1478 = vmatpush1.msra.mxu0 0.0
        %1479 = vmatprep.subr.mxu0 0.0
        %1480 = vmatpush1.msra.mxu0 0.0
        %1481 = vmatprep.subr.mxu0 0.0
        %1482 = vmatpush1.msra.mxu0 0.0
        %1483 = vmatprep.subr.mxu0 0.0
        %1484 = vmatpush1.msra.mxu0 0.0
        %1485 = vmatprep.subr.mxu0 0.0
        %1486 = vmatpush1.msra.mxu0 0.0
        %1487 = vmatprep.subr.mxu0 0.0
        %1488 = vmatpush1.msra.mxu0 0.0
        %1489 = vmatprep.subr.mxu0 0.0
        %1490 = vmatpush1.msra.mxu0 0.0
        %1491 = vmatprep.subr.mxu0 0.0
        %1492 = vmatpush1.msra.mxu0 0.0
        %1493 = vmatprep.subr.mxu0 0.0
        %1494 = vmatpush1.msra.mxu0 0.0
        %1495 = vmatprep.subr.mxu0 0.0
        %1496 = vmatpush1.msra.mxu0 0.0
        %1497 = vmatprep.subr.mxu0 0.0
        %1498 = vmatpush1.msra.mxu0 0.0
        %1499 = vmatprep.subr.mxu0 0.0
        %1500 = vmatpush1.msra.mxu0 0.0
        %1501 = vmatprep.subr.mxu0 0.0
        %1502 = vmatpush1.msra.mxu0 0.0
        %1503 = vmatprep.subr.mxu0 0.0
        %1504 = vmatpush1.msra.mxu0 0.0
        %1505 = vmatprep.subr.mxu0 0.0
        %1506 = vmatpush1.msra.mxu0 0.0
        %1507 = vmatprep.subr.mxu0 0.0
        %1508 = vmatpush1.msra.mxu0 0.0
        %1509 = vmatprep.subr.mxu0 0.0
        %1510 = vmatpush1.msra.mxu0 0.0
        %1511 = vmatprep.subr.mxu0 0.0
        %1512 = vmatpush1.msra.mxu0 0.0
        %1513 = vmatprep.subr.mxu0 0.0
        %1514 = vmatpush1.msra.mxu0 0.0
        %1515 = vmatprep.subr.mxu0 0.0
        %1516 = vmatpush1.msra.mxu0 0.0
        %1517 = vmatprep.subr.mxu0 0.0
        %1518 = vmatpush1.msra.mxu0 0.0
        %1519 = vmatprep.subr.mxu0 0.0
        %1520 = vmatpush1.msra.mxu0 0.0
        %1521 = vmatprep.subr.mxu0 0.0
        %1522 = vmatpush1.msra.mxu0 0.0
        %1523 = vmatprep.subr.mxu0 0.0
        %1524 = vmatpush1.msra.mxu0 0.0
        %1525 = vmatprep.subr.mxu0 0.0
        %1526 = vmatpush1.msra.mxu0 0.0
        %1527 = vmatprep.subr.mxu0 0.0
        %1528 = vmatpush1.msra.mxu0 0.0
        %1529 = vmatprep.subr.mxu0 0.0
        %1530 = vmatpush1.msra.mxu0 0.0
        %1531 = vmatprep.mubr.f32.mxu0 0.0
        %1532 = vmatmul.mubr.f32.gmra.mrb[0].mxu0 %v1465
        %v1533 = vpop.f32.mrb[0].mxu0
        %v1534 = vadd.f32 0.0, %v1533
        %v1535 = vpop.f32.mrb[0].mxu0
        %1536 = vdwg.mxu0
        %s1537 = scalar_lea.vmem [#allocation11], 24
        %v1538 = vld [vmem:[%s1537] sm:$0xff]
        %v1540 = vsel %vm695, %v1534, 0
        %1542 = vmatprep.subr.mxu0 0.0
        %1543 = vmatpush1.msra.mxu0 %v1538
        %1544 = vmatprep.subr.mxu0 0.0
        %1545 = vmatpush1.msra.mxu0 0.0
        %1546 = vmatprep.subr.mxu0 0.0
        %1547 = vmatpush1.msra.mxu0 0.0
        %1548 = vmatprep.subr.mxu0 0.0
        %1549 = vmatpush1.msra.mxu0 0.0
        %1550 = vmatprep.subr.mxu0 0.0
        %1551 = vmatpush1.msra.mxu0 0.0
        %1552 = vmatprep.subr.mxu0 0.0
        %1553 = vmatpush1.msra.mxu0 0.0
        %1554 = vmatprep.subr.mxu0 0.0
        %1555 = vmatpush1.msra.mxu0 0.0
        %1556 = vmatprep.subr.mxu0 0.0
        %1557 = vmatpush1.msra.mxu0 0.0
        %1558 = vmatprep.subr.mxu0 0.0
        %1559 = vmatpush1.msra.mxu0 0.0
        %1560 = vmatprep.subr.mxu0 0.0
        %1561 = vmatpush1.msra.mxu0 0.0
        %1562 = vmatprep.subr.mxu0 0.0
        %1563 = vmatpush1.msra.mxu0 0.0
        %1564 = vmatprep.subr.mxu0 0.0
        %1565 = vmatpush1.msra.mxu0 0.0
        %1566 = vmatprep.subr.mxu0 0.0
        %1567 = vmatpush1.msra.mxu0 0.0
        %1568 = vmatprep.subr.mxu0 0.0
        %1569 = vmatpush1.msra.mxu0 0.0
        %1570 = vmatprep.subr.mxu0 0.0
        %1571 = vmatpush1.msra.mxu0 0.0
        %1572 = vmatprep.subr.mxu0 0.0
        %1573 = vmatpush1.msra.mxu0 0.0
        %1574 = vmatprep.subr.mxu0 0.0
        %1575 = vmatpush1.msra.mxu0 0.0
        %1576 = vmatprep.subr.mxu0 0.0
        %1577 = vmatpush1.msra.mxu0 0.0
        %1578 = vmatprep.subr.mxu0 0.0
        %1579 = vmatpush1.msra.mxu0 0.0
        %1580 = vmatprep.subr.mxu0 0.0
        %1581 = vmatpush1.msra.mxu0 0.0
        %1582 = vmatprep.subr.mxu0 0.0
        %1583 = vmatpush1.msra.mxu0 0.0
        %1584 = vmatprep.subr.mxu0 0.0
        %1585 = vmatpush1.msra.mxu0 0.0
        %1586 = vmatprep.subr.mxu0 0.0
        %1587 = vmatpush1.msra.mxu0 0.0
        %1588 = vmatprep.subr.mxu0 0.0
        %1589 = vmatpush1.msra.mxu0 0.0
        %1590 = vmatprep.subr.mxu0 0.0
        %1591 = vmatpush1.msra.mxu0 0.0
        %1592 = vmatprep.subr.mxu0 0.0
        %1593 = vmatpush1.msra.mxu0 0.0
        %1594 = vmatprep.subr.mxu0 0.0
        %1595 = vmatpush1.msra.mxu0 0.0
        %1596 = vmatprep.subr.mxu0 0.0
        %1597 = vmatpush1.msra.mxu0 0.0
        %1598 = vmatprep.subr.mxu0 0.0
        %1599 = vmatpush1.msra.mxu0 0.0
        %1600 = vmatprep.subr.mxu0 0.0
        %1601 = vmatpush1.msra.mxu0 0.0
        %1602 = vmatprep.subr.mxu0 0.0
        %1603 = vmatpush1.msra.mxu0 0.0
        %1604 = vmatprep.subr.mxu0 0.0
        %1605 = vmatpush1.msra.mxu0 0.0
        %1606 = vmatprep.mubr.f32.mxu0 0.0
        %1607 = vmatmul.mubr.f32.gmra.mrb[0].mxu0 %v1540
        %v1608 = vpop.f32.mrb[0].mxu0
        %v1609 = vadd.f32 0.0, %v1608
        %v1610 = vpop.f32.mrb[0].mxu0
        %1611 = vdwg.mxu0
        %v1612 = vadd.f32 %v1381, %v1609
        %v1613 = vld [vmem:[%s7] sm:$0x1]
        %v1615 = vlaneseq
        %v1616 = vshrl.u32 %v1615, 7
        %v1617 = vsub.s32 0, %v1616
        %v1618 = vrot.slane %v1613, %v1617
        %v1620 = vadd.f32 %v1612, %v1618
        %1621 = vst.msk [vmem:[%s433] sm:$0xff] %vm447, %v1620
        %s1622 = sand.u32 %s221, 1
        %s1623 = scalar_lea.sflag [#allocation4], %s1622
        %s1624 = sand.u32 %s221, 1
        %s1625 = smul.addr %s1624, 8
        %s1626 = scalar_lea.vmem [#allocation13], %s1625
        // Predicated region
        $region77: #{tpu_custom_call.1} parent=51 // pred_check
          %p1627 = pneg %p231
        $region78: #{tpu_custom_call.1} parent=51 // pred_check_branch
          %1629 = sbr.rel (%p1627) target = $region80
        $region79: #{tpu_custom_call.1} parent=51 // pred_region
          %s1631 = ssub.s32 128, 128
          %1632 = vsyncadd %s1623, %s1631
          %s1633 = smul.addr %s30, 128
          %s1634 = scalar_lea.hbm %s8, %s1633
          %s1636 = sshll.u32 %s1626, 4
          %s1637 = int_to_ptr.vmem [resolvable:$true] %s1636
          %1639 = dma.vmem_to_hbm [thread:$0]  %s1637, 128, %s1634, %s1623
        $region80: #{tpu_custom_call.1} parent=51 // pred_fallthru
          _
      $region52: #{tpu_custom_call.1} parent=5 // pred_fallthru
        _
      %p1640 = scmp.le.s32.totalorder 2, %s25
      // Predicated region
      $region81: #{tpu_custom_call.1} parent=5 // pred_check
        %p1641 = pneg %p1640
      $region82: #{tpu_custom_call.1} parent=5 // pred_check_branch
        %1643 = sbr.rel (%p1641) target = $region84
      $region83: #{tpu_custom_call.1} parent=5 // pred_region
        %s1644 = ssub.s32 %s25, 2
        // Predicated region
        $region85: #{tpu_custom_call.1} parent=83 // pred_check
          %p1645 = pneg %p237
        $region86: #{tpu_custom_call.1} parent=83 // pred_check_branch
          %1647 = sbr.rel (%p1645) target = $region88
        $region87: #{tpu_custom_call.1} parent=83 // pred_region
          %s1648 = sand.u32 %s222, 1
          %s1649 = scalar_lea.sflag [#allocation4], %s1648
          %s1650 = sand.u32 %s222, 1
          %s1651 = smul.addr %s1650, 8
          %s1652 = scalar_lea.vmem [#allocation13], %s1651
          %1653 = dma.done %s1649, 128
        $region88: #{tpu_custom_call.1} parent=83 // pred_fallthru
          _
      $region84: #{tpu_custom_call.1} parent=5 // pred_fallthru
        _
    $region6: #{tpu_custom_call.1} parent=1 // loop_footer
      %s29 = sadd.s32 1, %s25
    $region7: #{tpu_custom_call.1} parent=1 // loop_footer_branch
      %24 = sbr.rel target = $region3
    $region8: #{tpu_custom_call.1} parent=1 // loop_exit
      _
    %1654 = vsyncpa [#allocation3], 1
    %s1655 = scalar_lea.sflag [#allocation3], 1
    %1656 = vsyncpa %s1655, 1
    %1657 = vsyncpa [#allocation6], 1
    %s1658 = scalar_lea.sflag [#allocation6], 1
    %1659 = vsyncpa %s1658, 1
    %1660 = vsyncpa [#allocation9], 1
    %s1661 = scalar_lea.sflag [#allocation9], 1
    %1662 = vsyncpa %s1661, 1
    %1663 = vsyncpa [#allocation12], 1
    %1664 = vsyncpa [#allocation4], 1
    %s1665 = scalar_lea.sflag [#allocation4], 1
    %1666 = vsyncpa %s1665, 1

</llo_original>
